<compile_context>
chip_gen: v6e
topology: v6e:2x2x1
jax: 0.10.0
libtpu: 0.0.40
codegen_flags: <defaults>
</compile_context>

<pallas_src>
import functools
import math

import jax
import jax.numpy as jnp
from jax import lax
from jax.experimental import pallas as pl
from jax.experimental.pallas import tpu as pltpu

LRELU_SLOPE = 0.1


def get_padding(kernel_size, dilation=1):
    return int((kernel_size * dilation - dilation) / 2)


@functools.lru_cache(maxsize=1)
def _vmem_budget_bytes():
    """Generation-aware VMEM budget (v7x 64 MiB/TC -> ~40 MiB; v5e/v6e 128 MiB -> ~80 MiB)."""
    try:
        cap = int(pltpu.get_tpu_info().vmem_capacity_bytes)
    except Exception:
        cap = 64 * 1024 * 1024
    return int(max(32 * 1024 * 1024, min(cap * 5 // 8, 100 * 1024 * 1024)))


# --------------------------------------------------------------------------- Pallas kernel
def _grouped_conv_kernel(x_ref, *refs, offsets, widths, H_out_pad, slope):
    # x_ref : (TN, Hs, P*Cin)        bf16  natural-layout, zero-padded input rows
    # refs  : n_g weight refs (wd_g, Cout) bf16, bias (1, Cout) f32, out (TN, H_out_pad, Cout)
    n_g = len(offsets)
    w_refs = refs[:n_g]
    b_ref = refs[n_g]
    o_ref = refs[n_g + 1]
    TN, _, PC = x_ref.shape
    Cout = o_ref.shape[-1]
    M = TN * H_out_pad

    acc = None
    for g in range(n_g):                 # static unroll: 2 groups for stride-3, K for stride-1
        off, wd = offsets[g], widths[g]
        if wd == PC:
            xg = x_ref[:, pl.ds(off, H_out_pad), :]
        else:
            xg = x_ref[:, pl.ds(off, H_out_pad), 0:wd]      # lane-prefix slice (static)
        xg = xg.reshape(M, wd)                              # free: H_out_pad % 8 == 0
        part = jnp.dot(xg, w_refs[g][...], preferred_element_type=jnp.float32)
        acc = part if acc is None else acc + part           # incremental: keeps f32 temps small
    y = acc + b_ref[...]
    if slope is not None:
        y = jnp.where(y >= 0, y, slope * y)
    o_ref[...] = y.reshape(TN, H_out_pad, Cout).astype(o_ref.dtype)


# --------------------------------------------------------------------------- XLA helper
def _conv1d_xla(x_nhc, w_hio, bias, stride, pad, slope=None, out_dtype=None):
    # Used for conv #1 (Cin=1), conv_post (Cout=1) and as an oversized-weight fallback.
    y = lax.conv_general_dilated(
        x_nhc, w_hio.astype(x_nhc.dtype), window_strides=(stride,), padding=[(pad, pad)],
        dimension_numbers=("NHC", "HIO", "NHC"), preferred_element_type=jnp.float32)
    y = y + bias.astype(jnp.float32)[None, None, :]
    if slope is not None:
        y = jnp.where(y >= 0, y, slope * y)
    if out_dtype is not None:
        y = y.astype(out_dtype)
    return y


# --------------------------------------------------------------------------- fused conv layer
def conv_kx1(x_nhc, w_kio, bias, stride, pad, slope):
    """Conv with kernel (K,1), stride (stride,1), padding (pad,0) on (N, H, Cin) activations.

    Grouped, im2col-free Pallas kernel: per-offset MXU matmuls over TN blocked period
    columns, f32 accumulation, bias + leaky_relu epilogue, bf16 output (N, H_out, Cout).
    """
    N, H, Cin = x_nhc.shape
    K, _, Cout = w_kio.shape
    P = stride
    Hp = H + 2 * pad
    H_out = (Hp - K) // P + 1
    H_out_pad = -(-H_out // 8) * 8                         # sublane-aligned row block
    n_off = -(-K // P)
    max_off = n_off - 1
    Hs = max(-(-Hp // P), H_out_pad + max_off)             # rows per phase (+ alignment slack)
    PC = P * Cin

    # Tap groups: output row h, group `off` contracts X3[:, h+off, 0:n_p*Cin] with Wg_off.
    offsets, widths, w_groups = [], [], []
    for off in range(n_off):
        n_p = min(P, K - off * P)
        offsets.append(off)
        widths.append(n_p * Cin)
        w_groups.append(
            w_kio[off * P: off * P + n_p].reshape(n_p * Cin, Cout).astype(jnp.bfloat16))
    bias2 = bias.reshape(1, Cout).astype(jnp.float32)

    budget = _vmem_budget_bytes()
    sizing = budget - 6 * 1024 * 1024                      # headroom for compiler temporaries
    # TODO(synk): pipeline_mode=pl.Buffered(1) would single-buffer the constant weight blocks;
    # here we budget for the default double-buffering to stay on the well-trodden API.
    w_bytes = 2 * sum(int(w.size) * 2 for w in w_groups)
    per_col = (2 * Hs * PC * 2                             # x block  (double-buffered bf16)
               + 2 * H_out_pad * Cout * 2                  # out block (double-buffered bf16)
               + 2 * H_out_pad * Cout * 4                  # f32 accumulator + dot partial
               + 2 * H_out_pad * PC * 2)                   # staged lhs slices
    if w_bytes + per_col > sizing:
        # TODO(synk): Cin-chunked streaming path for very large d_mult; XLA conv fallback.
        return _conv1d_xla(x_nhc, w_kio, bias, P, pad, slope=slope, out_dtype=jnp.bfloat16)

    tn_vmem = max(1, (sizing - w_bytes) // per_col)
    tn_m = -(-2048 // H_out_pad)                           # target ~2K matmul rows per step
    TN = int(max(1, min(tn_vmem, tn_m, N)))
    if TN >= N and N > 1:                                  # keep >= 2 blocks for v7x megacore
        TN = (N + 1) // 2
    n_blocks = -(-N // TN)
    TN = -(-N // n_blocks)                                 # minimize N padding
    N_pad = n_blocks * TN

    # Conv zero-padding + N/alignment padding folded into a single pad, then the FREE
    # natural-layout reshape (N, Hs*P, Cin) -> (N, Hs, P*Cin): no phase transpose in HBM.
    xp = jnp.pad(x_nhc.astype(jnp.bfloat16),
                 ((0, N_pad - N), (pad, Hs * P - H - pad), (0, 0)))
    x3 = xp.reshape(N_pad, Hs, PC)

    kernel = functools.partial(_grouped_conv_kernel, offsets=tuple(offsets),
                               widths=tuple(widths), H_out_pad=H_out_pad, slope=slope)
    in_specs = [pl.BlockSpec((TN, Hs, PC), lambda nb: (nb, 0, 0))]
    for wg in w_groups:                                    # constant index -> DMA'd once
        in_specs.append(pl.BlockSpec(wg.shape, lambda nb: (0, 0)))
    in_specs.append(pl.BlockSpec((1, Cout), lambda nb: (0, 0)))

    y_full = pl.pallas_call(
        kernel,
        out_shape=jax.ShapeDtypeStruct((N_pad, H_out_pad, Cout), jnp.bfloat16),
        grid_spec=pltpu.PrefetchScalarGridSpec(
            num_scalar_prefetch=0,
            grid=(n_blocks,),
            in_specs=in_specs,
            out_specs=pl.BlockSpec((TN, H_out_pad, Cout), lambda nb: (nb, 0, 0)),
        ),
        compiler_params=pltpu.CompilerParams(
            dimension_semantics=("parallel",),
            vmem_limit_bytes=budget,
        ),
    )(x3, *w_groups, bias2)
    return y_full[:N, :H_out, :]


# --------------------------------------------------------------------------- module
class DiscriminatorP:
    def __init__(self, d_mult, period, kernel_size=5, stride=3, key=None):
        self.period = period
        self.kernel_size = kernel_size
        self.stride = stride
        ch = [1,
              int(32 * d_mult), int(128 * d_mult), int(512 * d_mult),
              int(1024 * d_mult), int(1024 * d_mult)]
        key = jax.random.PRNGKey(0) if key is None else key

        def init_conv(key, cin, cout, K):
            key, wk, bk = jax.random.split(key, 3)
            fan_in = cin * K
            w = jax.random.normal(wk, (cout, cin, K, 1), jnp.float32) / math.sqrt(fan_in)
            b = jax.random.normal(bk, (cout,), jnp.float32) * 0.01
            # Conv2d weight (Cout, Cin, K, 1) -> tap-major (K, Cin, Cout)
            return key, jnp.transpose(w[..., 0], (2, 1, 0)), b

        # TODO(synk): weight_norm at init is identity on the effective weight, so it is folded
        # into the deterministic init; pretrained g/v params must be folded the same way.
        self.layers = []
        for i in range(5):
            cin, cout = ch[i], ch[i + 1]
            key, w_kio, b = init_conv(key, cin, cout, kernel_size)
            s = stride if i < 4 else 1
            p = get_padding(5, 1) if i < 4 else 2
            kind = "xla" if i == 0 else "pallas"           # Cin=1 first conv is lane-starved
            self.layers.append((kind, w_kio, b, s, p))
        key, wp_kio, bp = init_conv(key, ch[5], 1, 3)
        self.conv_post = (wp_kio, bp, 1, 1)                # Cout=1 -> XLA conv

    def __call__(self, x):
        # x: (B, 1, T) float32
        B, C, T = x.shape
        if T % self.period != 0:
            n_pad = self.period - T % self.period
            if n_pad >= T:                                 # reflect pad constraint (as in torch)
                raise ValueError("reflect pad requires period - T % period < T")
            x = jnp.pad(x, ((0, 0), (0, 0), (0, n_pad)), mode="reflect")
            T = T + n_pad
        W = self.period
        H = T // W
        # NCHW (B,1,H,W) -> channels-last period columns (B*W, H, 1); stays in this layout.
        x = x.reshape(B, C, H, W).transpose(0, 3, 2, 1).reshape(B * W, H, C)

        fmap = []
        for kind, w, b, s, p in self.layers:
            if kind == "xla":
                x = _conv1d_xla(x, w, b, s, p, slope=LRELU_SLOPE, out_dtype=jnp.bfloat16)
            else:
                x = conv_kx1(x, w, b, s, p, slope=LRELU_SLOPE)
            # fmap entries in f32 NCHW like the torch reference (values computed in bf16)
            fmap.append(self._to_nchw(x, B, W))
        wp, bp, sp, pp = self.conv_post
        y = _conv1d_xla(x, wp, bp, sp, pp, slope=None)     # f32 logits
        fmap.append(self._to_nchw(y, B, W))
        Hp = y.shape[1]
        out = y.reshape(B, W, Hp).transpose(0, 2, 1).reshape(B, Hp * W)
        return out, fmap

    @staticmethod
    def _to_nchw(y, B, W):
        N, H, C = y.shape
        return y.astype(jnp.float32).reshape(B, W, H, C).transpose(0, 3, 2, 1)


if __name__ == "__main__":
    key = jax.random.PRNGKey(0)
    kx, kp = jax.random.split(key)

    # small shapes: batch=2, channels=1, t=62 (not divisible by period=4 -> exercises reflect pad)
    B, C, T = 2, 1, 62
    period = 4
    d_mult = 0.125          # channels 4, 16, 64, 128, 128
    x = jax.random.normal(kx, (B, C, T), jnp.float32)

    disc = DiscriminatorP(d_mult=d_mult, period=period, key=kp)
    fwd = jax.jit(disc.__call__)
    out, fmap = fwd(x)
    out = jax.block_until_ready(out)
    for f in fmap:
        jax.block_until_ready(f)

    assert out.shape[0] == B and out.ndim == 2
    assert len(fmap) == 6
    print("KERNEL_OK")
</pallas_src>

<mosaic_0001>
module attributes {stable_mosaic.version = 11 : i64} {
  func.func @_grouped_conv_kernel(%arg0: i32, %arg1: memref<4x9x12xbf16, #tpu.memory_space<vmem>>, %arg2: memref<12x16xbf16, #tpu.memory_space<vmem>>, %arg3: memref<8x16xbf16, #tpu.memory_space<vmem>>, %arg4: memref<1x16xf32, #tpu.memory_space<vmem>>, %arg5: memref<4x8x16xbf16, #tpu.memory_space<vmem>>) attributes {dimension_semantics = [#tpu.dimension_semantics<parallel>], iteration_bounds = array<i64: 2>, scalar_prefetch = 0 : i64, scratch_operands = 0 : i64, tpu.core_type = #tpu.core_type<tc>, window_params = [{transform_indices = @transform_0, window_bounds = array<i64: 4, 9, 12>}, {pipeline_mode = #tpu.pipeline_mode<synchronous>, transform_indices = @transform_1, window_bounds = array<i64: 12, 16>}, {pipeline_mode = #tpu.pipeline_mode<synchronous>, transform_indices = @transform_2, window_bounds = array<i64: 8, 16>}, {pipeline_mode = #tpu.pipeline_mode<synchronous>, transform_indices = @transform_3, window_bounds = array<i64: 1, 16>}, {transform_indices = @transform_4, window_bounds = array<i64: 4, 8, 16>}]} {
    %c0 = arith.constant 0 : index
    %c0_0 = arith.constant 0 : index
    %c0_1 = arith.constant 0 : index
    %0 = vector.load %arg1[%c0, %c0_0, %c0_1] : memref<4x9x12xbf16, #tpu.memory_space<vmem>>, vector<4x8x12xbf16>
    %1 = vector.shape_cast %0 : vector<4x8x12xbf16> to vector<32x12xbf16>
    %c0_2 = arith.constant 0 : index
    %c0_3 = arith.constant 0 : index
    %2 = vector.load %arg2[%c0_2, %c0_3] : memref<12x16xbf16, #tpu.memory_space<vmem>>, vector<12x16xbf16>
    %cst = arith.constant dense<0.000000e+00> : vector<32x16xf32>
    %3 = tpu.matmul %1, %2, %cst {dimension_numbers = #tpu.dot_dimension_numbers<[1], [0], [0], [1], [0, 0, 1, 1], [], []>} : vector<32x12xbf16>, vector<12x16xbf16>, vector<32x16xf32> -> vector<32x16xf32>
    %c0_4 = arith.constant 0 : index
    %c1 = arith.constant 1 : index
    %c0_5 = arith.constant 0 : index
    %4 = vector.load %arg1[%c0_4, %c1, %c0_5] : memref<4x9x12xbf16, #tpu.memory_space<vmem>>, vector<4x8x8xbf16>
    %5 = vector.shape_cast %4 : vector<4x8x8xbf16> to vector<32x8xbf16>
    %c0_6 = arith.constant 0 : index
    %c0_7 = arith.constant 0 : index
    %6 = vector.load %arg3[%c0_6, %c0_7] : memref<8x16xbf16, #tpu.memory_space<vmem>>, vector<8x16xbf16>
    %cst_8 = arith.constant dense<0.000000e+00> : vector<32x16xf32>
    %7 = tpu.matmul %5, %6, %cst_8 {dimension_numbers = #tpu.dot_dimension_numbers<[1], [0], [0], [1], [0, 0, 1, 1], [], []>} : vector<32x8xbf16>, vector<8x16xbf16>, vector<32x16xf32> -> vector<32x16xf32>
    %8 = arith.addf %3, %7 : vector<32x16xf32>
    %c0_9 = arith.constant 0 : index
    %c0_10 = arith.constant 0 : index
    %9 = vector.load %arg4[%c0_9, %c0_10] : memref<1x16xf32, #tpu.memory_space<vmem>>, vector<1x16xf32>
    %10 = vector.broadcast %9 : vector<1x16xf32> to vector<32x16xf32>
    %11 = arith.addf %8, %10 : vector<32x16xf32>
    %cst_11 = arith.constant 0.000000e+00 : f32
    %12 = vector.broadcast %cst_11 : f32 to vector<32x16xf32>
    %13 = arith.cmpf oge, %11, %12 : vector<32x16xf32>
    %cst_12 = arith.constant 1.000000e-01 : f32
    %14 = vector.broadcast %cst_12 : f32 to vector<32x16xf32>
    %15 = arith.mulf %14, %11 : vector<32x16xf32>
    %16 = arith.select %13, %11, %15 : vector<32x16xi1>, vector<32x16xf32>
    %17 = vector.shape_cast %16 : vector<32x16xf32> to vector<4x8x16xf32>
    %18 = arith.truncf %17 : vector<4x8x16xf32> to vector<4x8x16xbf16>
    %c0_13 = arith.constant 0 : index
    %c0_14 = arith.constant 0 : index
    %c0_15 = arith.constant 0 : index
    %19 = vector.load %arg5[%c0_13, %c0_14, %c0_15] : memref<4x8x16xbf16, #tpu.memory_space<vmem>>, vector<4x8x16xbf16>
    tpu.vector_store %arg5[%c0_13, %c0_14, %c0_15], %18 {strides = array<i32>} : memref<4x8x16xbf16, #tpu.memory_space<vmem>>, vector<4x8x16xbf16>,
    return
  }
  func.func @transform_0(%arg0: i32) -> (i32, i32, i32) {
    %c0_i32 = arith.constant 0 : i32
    %c0_i32_0 = arith.constant 0 : i32
    %c0_i32_1 = arith.constant 0 : i32
    return %arg0, %c0_i32, %c0_i32_0 : i32, i32, i32
  }
  func.func @transform_1(%arg0: i32) -> (i32, i32) {
    %c0_i32 = arith.constant 0 : i32
    %c0_i32_0 = arith.constant 0 : i32
    %c0_i32_1 = arith.constant 0 : i32
    return %c0_i32, %c0_i32_0 : i32, i32
  }
  func.func @transform_2(%arg0: i32) -> (i32, i32) {
    %c0_i32 = arith.constant 0 : i32
    %c0_i32_0 = arith.constant 0 : i32
    %c0_i32_1 = arith.constant 0 : i32
    return %c0_i32, %c0_i32_0 : i32, i32
  }
  func.func @transform_3(%arg0: i32) -> (i32, i32) {
    %c0_i32 = arith.constant 0 : i32
    %c0_i32_0 = arith.constant 0 : i32
    %c0_i32_1 = arith.constant 0 : i32
    return %c0_i32, %c0_i32_0 : i32, i32
  }
  func.func @transform_4(%arg0: i32) -> (i32, i32, i32) {
    %c0_i32 = arith.constant 0 : i32
    %c0_i32_0 = arith.constant 0 : i32
    %c0_i32_1 = arith.constant 0 : i32
    return %arg0, %c0_i32, %c0_i32_0 : i32, i32, i32
  }
}

module attributes {stable_mosaic.version = 11 : i64} {
  func.func @_grouped_conv_kernel(%arg0: i32, %arg1: memref<4x9x48xbf16, #tpu.memory_space<vmem>>, %arg2: memref<48x64xbf16, #tpu.memory_space<vmem>>, %arg3: memref<32x64xbf16, #tpu.memory_space<vmem>>, %arg4: memref<1x64xf32, #tpu.memory_space<vmem>>, %arg5: memref<4x8x64xbf16, #tpu.memory_space<vmem>>) attributes {dimension_semantics = [#tpu.dimension_semantics<parallel>], iteration_bounds = array<i64: 2>, scalar_prefetch = 0 : i64, scratch_operands = 0 : i64, tpu.core_type = #tpu.core_type<tc>, window_params = [{transform_indices = @transform_0, window_bounds = array<i64: 4, 9, 48>}, {pipeline_mode = #tpu.pipeline_mode<synchronous>, transform_indices = @transform_1, window_bounds = array<i64: 48, 64>}, {pipeline_mode = #tpu.pipeline_mode<synchronous>, transform_indices = @transform_2, window_bounds = array<i64: 32, 64>}, {pipeline_mode = #tpu.pipeline_mode<synchronous>, transform_indices = @transform_3, window_bounds = array<i64: 1, 64>}, {transform_indices = @transform_4, window_bounds = array<i64: 4, 8, 64>}]} {
    %c0 = arith.constant 0 : index
    %c0_0 = arith.constant 0 : index
    %c0_1 = arith.constant 0 : index
    %0 = vector.load %arg1[%c0, %c0_0, %c0_1] : memref<4x9x48xbf16, #tpu.memory_space<vmem>>, vector<4x8x48xbf16>
    %1 = vector.shape_cast %0 : vector<4x8x48xbf16> to vector<32x48xbf16>
    %c0_2 = arith.constant 0 : index
    %c0_3 = arith.constant 0 : index
    %2 = vector.load %arg2[%c0_2, %c0_3] : memref<48x64xbf16, #tpu.memory_space<vmem>>, vector<48x64xbf16>
    %cst = arith.constant dense<0.000000e+00> : vector<32x64xf32>
    %3 = tpu.matmul %1, %2, %cst {dimension_numbers = #tpu.dot_dimension_numbers<[1], [0], [0], [1], [0, 0, 1, 1], [], []>} : vector<32x48xbf16>, vector<48x64xbf16>, vector<32x64xf32> -> vector<32x64xf32>
    %c0_4 = arith.constant 0 : index
    %c1 = arith.constant 1 : index
    %c0_5 = arith.constant 0 : index
    %4 = vector.load %arg1[%c0_4, %c1, %c0_5] : memref<4x9x48xbf16, #tpu.memory_space<vmem>>, vector<4x8x32xbf16>
    %5 = vector.shape_cast %4 : vector<4x8x32xbf16> to vector<32x32xbf16>
    %c0_6 = arith.constant 0 : index
    %c0_7 = arith.constant 0 : index
    %6 = vector.load %arg3[%c0_6, %c0_7] : memref<32x64xbf16, #tpu.memory_space<vmem>>, vector<32x64xbf16>
    %cst_8 = arith.constant dense<0.000000e+00> : vector<32x64xf32>
    %7 = tpu.matmul %5, %6, %cst_8 {dimension_numbers = #tpu.dot_dimension_numbers<[1], [0], [0], [1], [0, 0, 1, 1], [], []>} : vector<32x32xbf16>, vector<32x64xbf16>, vector<32x64xf32> -> vector<32x64xf32>
    %8 = arith.addf %3, %7 : vector<32x64xf32>
    %c0_9 = arith.constant 0 : index
    %c0_10 = arith.constant 0 : index
    %9 = vector.load %arg4[%c0_9, %c0_10] : memref<1x64xf32, #tpu.memory_space<vmem>>, vector<1x64xf32>
    %10 = vector.broadcast %9 : vector<1x64xf32> to vector<32x64xf32>
    %11 = arith.addf %8, %10 : vector<32x64xf32>
    %cst_11 = arith.constant 0.000000e+00 : f32
    %12 = vector.broadcast %cst_11 : f32 to vector<32x64xf32>
    %13 = arith.cmpf oge, %11, %12 : vector<32x64xf32>
    %cst_12 = arith.constant 1.000000e-01 : f32
    %14 = vector.broadcast %cst_12 : f32 to vector<32x64xf32>
    %15 = arith.mulf %14, %11 : vector<32x64xf32>
    %16 = arith.select %13, %11, %15 : vector<32x64xi1>, vector<32x64xf32>
    %17 = vector.shape_cast %16 : vector<32x64xf32> to vector<4x8x64xf32>
    %18 = arith.truncf %17 : vector<4x8x64xf32> to vector<4x8x64xbf16>
    %c0_13 = arith.constant 0 : index
    %c0_14 = arith.constant 0 : index
    %c0_15 = arith.constant 0 : index
    %19 = vector.load %arg5[%c0_13, %c0_14, %c0_15] : memref<4x8x64xbf16, #tpu.memory_space<vmem>>, vector<4x8x64xbf16>
    tpu.vector_store %arg5[%c0_13, %c0_14, %c0_15], %18 {strides = array<i32>} : memref<4x8x64xbf16, #tpu.memory_space<vmem>>, vector<4x8x64xbf16>,
    return
  }
  func.func @transform_0(%arg0: i32) -> (i32, i32, i32) {
    %c0_i32 = arith.constant 0 : i32
    %c0_i32_0 = arith.constant 0 : i32
    %c0_i32_1 = arith.constant 0 : i32
    return %arg0, %c0_i32, %c0_i32_0 : i32, i32, i32
  }
  func.func @transform_1(%arg0: i32) -> (i32, i32) {
    %c0_i32 = arith.constant 0 : i32
    %c0_i32_0 = arith.constant 0 : i32
    %c0_i32_1 = arith.constant 0 : i32
    return %c0_i32, %c0_i32_0 : i32, i32
  }
  func.func @transform_2(%arg0: i32) -> (i32, i32) {
    %c0_i32 = arith.constant 0 : i32
    %c0_i32_0 = arith.constant 0 : i32
    %c0_i32_1 = arith.constant 0 : i32
    return %c0_i32, %c0_i32_0 : i32, i32
  }
  func.func @transform_3(%arg0: i32) -> (i32, i32) {
    %c0_i32 = arith.constant 0 : i32
    %c0_i32_0 = arith.constant 0 : i32
    %c0_i32_1 = arith.constant 0 : i32
    return %c0_i32, %c0_i32_0 : i32, i32
  }
  func.func @transform_4(%arg0: i32) -> (i32, i32, i32) {
    %c0_i32 = arith.constant 0 : i32
    %c0_i32_0 = arith.constant 0 : i32
    %c0_i32_1 = arith.constant 0 : i32
    return %arg0, %c0_i32, %c0_i32_0 : i32, i32, i32
  }
}

module attributes {stable_mosaic.version = 11 : i64} {
  func.func @_grouped_conv_kernel(%arg0: i32, %arg1: memref<4x9x192xbf16, #tpu.memory_space<vmem>>, %arg2: memref<192x128xbf16, #tpu.memory_space<vmem>>, %arg3: memref<128x128xbf16, #tpu.memory_space<vmem>>, %arg4: memref<1x128xf32, #tpu.memory_space<vmem>>, %arg5: memref<4x8x128xbf16, #tpu.memory_space<vmem>>) attributes {dimension_semantics = [#tpu.dimension_semantics<parallel>], iteration_bounds = array<i64: 2>, scalar_prefetch = 0 : i64, scratch_operands = 0 : i64, tpu.core_type = #tpu.core_type<tc>, window_params = [{transform_indices = @transform_0, window_bounds = array<i64: 4, 9, 192>}, {pipeline_mode = #tpu.pipeline_mode<synchronous>, transform_indices = @transform_1, window_bounds = array<i64: 192, 128>}, {pipeline_mode = #tpu.pipeline_mode<synchronous>, transform_indices = @transform_2, window_bounds = array<i64: 128, 128>}, {pipeline_mode = #tpu.pipeline_mode<synchronous>, transform_indices = @transform_3, window_bounds = array<i64: 1, 128>}, {transform_indices = @transform_4, window_bounds = array<i64: 4, 8, 128>}]} {
    %c0 = arith.constant 0 : index
    %c0_0 = arith.constant 0 : index
    %c0_1 = arith.constant 0 : index
    %0 = vector.load %arg1[%c0, %c0_0, %c0_1] : memref<4x9x192xbf16, #tpu.memory_space<vmem>>, vector<4x8x192xbf16>
    %1 = vector.shape_cast %0 : vector<4x8x192xbf16> to vector<32x192xbf16>
    %c0_2 = arith.constant 0 : index
    %c0_3 = arith.constant 0 : index
    %2 = vector.load %arg2[%c0_2, %c0_3] : memref<192x128xbf16, #tpu.memory_space<vmem>>, vector<192x128xbf16>
    %cst = arith.constant dense<0.000000e+00> : vector<32x128xf32>
    %3 = tpu.matmul %1, %2, %cst {dimension_numbers = #tpu.dot_dimension_numbers<[1], [0], [0], [1], [0, 0, 1, 1], [], []>} : vector<32x192xbf16>, vector<192x128xbf16>, vector<32x128xf32> -> vector<32x128xf32>
    %c0_4 = arith.constant 0 : index
    %c1 = arith.constant 1 : index
    %c0_5 = arith.constant 0 : index
    %4 = vector.load %arg1[%c0_4, %c1, %c0_5] : memref<4x9x192xbf16, #tpu.memory_space<vmem>>, vector<4x8x128xbf16>
    %5 = vector.shape_cast %4 : vector<4x8x128xbf16> to vector<32x128xbf16>
    %c0_6 = arith.constant 0 : index
    %c0_7 = arith.constant 0 : index
    %6 = vector.load %arg3[%c0_6, %c0_7] : memref<128x128xbf16, #tpu.memory_space<vmem>>, vector<128x128xbf16>
    %cst_8 = arith.constant dense<0.000000e+00> : vector<32x128xf32>
    %7 = tpu.matmul %5, %6, %cst_8 {dimension_numbers = #tpu.dot_dimension_numbers<[1], [0], [0], [1], [0, 0, 1, 1], [], []>} : vector<32x128xbf16>, vector<128x128xbf16>, vector<32x128xf32> -> vector<32x128xf32>
    %8 = arith.addf %3, %7 : vector<32x128xf32>
    %c0_9 = arith.constant 0 : index
    %c0_10 = arith.constant 0 : index
    %9 = vector.load %arg4[%c0_9, %c0_10] : memref<1x128xf32, #tpu.memory_space<vmem>>, vector<1x128xf32>
    %10 = vector.broadcast %9 : vector<1x128xf32> to vector<32x128xf32>
    %11 = arith.addf %8, %10 : vector<32x128xf32>
    %cst_11 = arith.constant 0.000000e+00 : f32
    %12 = vector.broadcast %cst_11 : f32 to vector<32x128xf32>
    %13 = arith.cmpf oge, %11, %12 : vector<32x128xf32>
    %cst_12 = arith.constant 1.000000e-01 : f32
    %14 = vector.broadcast %cst_12 : f32 to vector<32x128xf32>
    %15 = arith.mulf %14, %11 : vector<32x128xf32>
    %16 = arith.select %13, %11, %15 : vector<32x128xi1>, vector<32x128xf32>
    %17 = vector.shape_cast %16 : vector<32x128xf32> to vector<4x8x128xf32>
    %18 = arith.truncf %17 : vector<4x8x128xf32> to vector<4x8x128xbf16>
    %c0_13 = arith.constant 0 : index
    %c0_14 = arith.constant 0 : index
    %c0_15 = arith.constant 0 : index
    %19 = vector.load %arg5[%c0_13, %c0_14, %c0_15] : memref<4x8x128xbf16, #tpu.memory_space<vmem>>, vector<4x8x128xbf16>
    tpu.vector_store %arg5[%c0_13, %c0_14, %c0_15], %18 {strides = array<i32>} : memref<4x8x128xbf16, #tpu.memory_space<vmem>>, vector<4x8x128xbf16>,
    return
  }
  func.func @transform_0(%arg0: i32) -> (i32, i32, i32) {
    %c0_i32 = arith.constant 0 : i32
    %c0_i32_0 = arith.constant 0 : i32
    %c0_i32_1 = arith.constant 0 : i32
    return %arg0, %c0_i32, %c0_i32_0 : i32, i32, i32
  }
  func.func @transform_1(%arg0: i32) -> (i32, i32) {
    %c0_i32 = arith.constant 0 : i32
    %c0_i32_0 = arith.constant 0 : i32
    %c0_i32_1 = arith.constant 0 : i32
    return %c0_i32, %c0_i32_0 : i32, i32
  }
  func.func @transform_2(%arg0: i32) -> (i32, i32) {
    %c0_i32 = arith.constant 0 : i32
    %c0_i32_0 = arith.constant 0 : i32
    %c0_i32_1 = arith.constant 0 : i32
    return %c0_i32, %c0_i32_0 : i32, i32
  }
  func.func @transform_3(%arg0: i32) -> (i32, i32) {
    %c0_i32 = arith.constant 0 : i32
    %c0_i32_0 = arith.constant 0 : i32
    %c0_i32_1 = arith.constant 0 : i32
    return %c0_i32, %c0_i32_0 : i32, i32
  }
  func.func @transform_4(%arg0: i32) -> (i32, i32, i32) {
    %c0_i32 = arith.constant 0 : i32
    %c0_i32_0 = arith.constant 0 : i32
    %c0_i32_1 = arith.constant 0 : i32
    return %arg0, %c0_i32, %c0_i32_0 : i32, i32, i32
  }
}

module attributes {stable_mosaic.version = 11 : i64} {
  func.func @_grouped_conv_kernel(%arg0: i32, %arg1: memref<4x12x128xbf16, #tpu.memory_space<vmem>>, %arg2: memref<128x128xbf16, #tpu.memory_space<vmem>>, %arg3: memref<128x128xbf16, #tpu.memory_space<vmem>>, %arg4: memref<128x128xbf16, #tpu.memory_space<vmem>>, %arg5: memref<128x128xbf16, #tpu.memory_space<vmem>>, %arg6: memref<128x128xbf16, #tpu.memory_space<vmem>>, %arg7: memref<1x128xf32, #tpu.memory_space<vmem>>, %arg8: memref<4x8x128xbf16, #tpu.memory_space<vmem>>) attributes {dimension_semantics = [#tpu.dimension_semantics<parallel>], iteration_bounds = array<i64: 2>, scalar_prefetch = 0 : i64, scratch_operands = 0 : i64, tpu.core_type = #tpu.core_type<tc>, window_params = [{transform_indices = @transform_0, window_bounds = array<i64: 4, 12, 128>}, {pipeline_mode = #tpu.pipeline_mode<synchronous>, transform_indices = @transform_1, window_bounds = array<i64: 128, 128>}, {pipeline_mode = #tpu.pipeline_mode<synchronous>, transform_indices = @transform_2, window_bounds = array<i64: 128, 128>}, {pipeline_mode = #tpu.pipeline_mode<synchronous>, transform_indices = @transform_3, window_bounds = array<i64: 128, 128>}, {pipeline_mode = #tpu.pipeline_mode<synchronous>, transform_indices = @transform_4, window_bounds = array<i64: 128, 128>}, {pipeline_mode = #tpu.pipeline_mode<synchronous>, transform_indices = @transform_5, window_bounds = array<i64: 128, 128>}, {pipeline_mode = #tpu.pipeline_mode<synchronous>, transform_indices = @transform_6, window_bounds = array<i64: 1, 128>}, {transform_indices = @transform_7, window_bounds = array<i64: 4, 8, 128>}]} {
    %c0 = arith.constant 0 : index
    %c0_0 = arith.constant 0 : index
    %c0_1 = arith.constant 0 : index
    %0 = vector.load %arg1[%c0, %c0_0, %c0_1] : memref<4x12x128xbf16, #tpu.memory_space<vmem>>, vector<4x8x128xbf16>
    %1 = vector.shape_cast %0 : vector<4x8x128xbf16> to vector<32x128xbf16>
    %c0_2 = arith.constant 0 : index
    %c0_3 = arith.constant 0 : index
    %2 = vector.load %arg2[%c0_2, %c0_3] : memref<128x128xbf16, #tpu.memory_space<vmem>>, vector<128x128xbf16>
    %cst = arith.constant dense<0.000000e+00> : vector<32x128xf32>
    %3 = tpu.matmul %1, %2, %cst {dimension_numbers = #tpu.dot_dimension_numbers<[1], [0], [0], [1], [0, 0, 1, 1], [], []>} : vector<32x128xbf16>, vector<128x128xbf16>, vector<32x128xf32> -> vector<32x128xf32>
    %c0_4 = arith.constant 0 : index
    %c1 = arith.constant 1 : index
    %c0_5 = arith.constant 0 : index
    %4 = vector.load %arg1[%c0_4, %c1, %c0_5] : memref<4x12x128xbf16, #tpu.memory_space<vmem>>, vector<4x8x128xbf16>
    %5 = vector.shape_cast %4 : vector<4x8x128xbf16> to vector<32x128xbf16>
    %c0_6 = arith.constant 0 : index
    %c0_7 = arith.constant 0 : index
    %6 = vector.load %arg3[%c0_6, %c0_7] : memref<128x128xbf16, #tpu.memory_space<vmem>>, vector<128x128xbf16>
    %cst_8 = arith.constant dense<0.000000e+00> : vector<32x128xf32>
    %7 = tpu.matmul %5, %6, %cst_8 {dimension_numbers = #tpu.dot_dimension_numbers<[1], [0], [0], [1], [0, 0, 1, 1], [], []>} : vector<32x128xbf16>, vector<128x128xbf16>, vector<32x128xf32> -> vector<32x128xf32>
    %8 = arith.addf %3, %7 : vector<32x128xf32>
    %c0_9 = arith.constant 0 : index
    %c2 = arith.constant 2 : index
    %c0_10 = arith.constant 0 : index
    %9 = vector.load %arg1[%c0_9, %c2, %c0_10] : memref<4x12x128xbf16, #tpu.memory_space<vmem>>, vector<4x8x128xbf16>
    %10 = vector.shape_cast %9 : vector<4x8x128xbf16> to vector<32x128xbf16>
    %c0_11 = arith.constant 0 : index
    %c0_12 = arith.constant 0 : index
    %11 = vector.load %arg4[%c0_11, %c0_12] : memref<128x128xbf16, #tpu.memory_space<vmem>>, vector<128x128xbf16>
    %cst_13 = arith.constant dense<0.000000e+00> : vector<32x128xf32>
    %12 = tpu.matmul %10, %11, %cst_13 {dimension_numbers = #tpu.dot_dimension_numbers<[1], [0], [0], [1], [0, 0, 1, 1], [], []>} : vector<32x128xbf16>, vector<128x128xbf16>, vector<32x128xf32> -> vector<32x128xf32>
    %13 = arith.addf %8, %12 : vector<32x128xf32>
    %c0_14 = arith.constant 0 : index
    %c3 = arith.constant 3 : index
    %c0_15 = arith.constant 0 : index
    %14 = vector.load %arg1[%c0_14, %c3, %c0_15] : memref<4x12x128xbf16, #tpu.memory_space<vmem>>, vector<4x8x128xbf16>
    %15 = vector.shape_cast %14 : vector<4x8x128xbf16> to vector<32x128xbf16>
    %c0_16 = arith.constant 0 : index
    %c0_17 = arith.constant 0 : index
    %16 = vector.load %arg5[%c0_16, %c0_17] : memref<128x128xbf16, #tpu.memory_space<vmem>>, vector<128x128xbf16>
    %cst_18 = arith.constant dense<0.000000e+00> : vector<32x128xf32>
    %17 = tpu.matmul %15, %16, %cst_18 {dimension_numbers = #tpu.dot_dimension_numbers<[1], [0], [0], [1], [0, 0, 1, 1], [], []>} : vector<32x128xbf16>, vector<128x128xbf16>, vector<32x128xf32> -> vector<32x128xf32>
    %18 = arith.addf %13, %17 : vector<32x128xf32>
    %c0_19 = arith.constant 0 : index
    %c4 = arith.constant 4 : index
    %c0_20 = arith.constant 0 : index
    %19 = vector.load %arg1[%c0_19, %c4, %c0_20] : memref<4x12x128xbf16, #tpu.memory_space<vmem>>, vector<4x8x128xbf16>
    %20 = vector.shape_cast %19 : vector<4x8x128xbf16> to vector<32x128xbf16>
    %c0_21 = arith.constant 0 : index
    %c0_22 = arith.constant 0 : index
    %21 = vector.load %arg6[%c0_21, %c0_22] : memref<128x128xbf16, #tpu.memory_space<vmem>>, vector<128x128xbf16>
    %cst_23 = arith.constant dense<0.000000e+00> : vector<32x128xf32>
    %22 = tpu.matmul %20, %21, %cst_23 {dimension_numbers = #tpu.dot_dimension_numbers<[1], [0], [0], [1], [0, 0, 1, 1], [], []>} : vector<32x128xbf16>, vector<128x128xbf16>, vector<32x128xf32> -> vector<32x128xf32>
    %23 = arith.addf %18, %22 : vector<32x128xf32>
    %c0_24 = arith.constant 0 : index
    %c0_25 = arith.constant 0 : index
    %24 = vector.load %arg7[%c0_24, %c0_25] : memref<1x128xf32, #tpu.memory_space<vmem>>, vector<1x128xf32>
    %25 = vector.broadcast %24 : vector<1x128xf32> to vector<32x128xf32>
    %26 = arith.addf %23, %25 : vector<32x128xf32>
    %cst_26 = arith.constant 0.000000e+00 : f32
    %27 = vector.broadcast %cst_26 : f32 to vector<32x128xf32>
    %28 = arith.cmpf oge, %26, %27 : vector<32x128xf32>
    %cst_27 = arith.constant 1.000000e-01 : f32
    %29 = vector.broadcast %cst_27 : f32 to vector<32x128xf32>
    %30 = arith.mulf %29, %26 : vector<32x128xf32>
    %31 = arith.select %28, %26, %30 : vector<32x128xi1>, vector<32x128xf32>
    %32 = vector.shape_cast %31 : vector<32x128xf32> to vector<4x8x128xf32>
    %33 = arith.truncf %32 : vector<4x8x128xf32> to vector<4x8x128xbf16>
    %c0_28 = arith.constant 0 : index
    %c0_29 = arith.constant 0 : index
    %c0_30 = arith.constant 0 : index
    %34 = vector.load %arg8[%c0_28, %c0_29, %c0_30] : memref<4x8x128xbf16, #tpu.memory_space<vmem>>, vector<4x8x128xbf16>
    tpu.vector_store %arg8[%c0_28, %c0_29, %c0_30], %33 {strides = array<i32>} : memref<4x8x128xbf16, #tpu.memory_space<vmem>>, vector<4x8x128xbf16>,
    return
  }
  func.func @transform_0(%arg0: i32) -> (i32, i32, i32) {
    %c0_i32 = arith.constant 0 : i32
    %c0_i32_0 = arith.constant 0 : i32
    %c0_i32_1 = arith.constant 0 : i32
    return %arg0, %c0_i32, %c0_i32_0 : i32, i32, i32
  }
  func.func @transform_1(%arg0: i32) -> (i32, i32) {
    %c0_i32 = arith.constant 0 : i32
    %c0_i32_0 = arith.constant 0 : i32
    %c0_i32_1 = arith.constant 0 : i32
    return %c0_i32, %c0_i32_0 : i32, i32
  }
  func.func @transform_2(%arg0: i32) -> (i32, i32) {
    %c0_i32 = arith.constant 0 : i32
    %c0_i32_0 = arith.constant 0 : i32
    %c0_i32_1 = arith.constant 0 : i32
    return %c0_i32, %c0_i32_0 : i32, i32
  }
  func.func @transform_3(%arg0: i32) -> (i32, i32) {
    %c0_i32 = arith.constant 0 : i32
    %c0_i32_0 = arith.constant 0 : i32
    %c0_i32_1 = arith.constant 0 : i32
    return %c0_i32, %c0_i32_0 : i32, i32
  }
  func.func @transform_4(%arg0: i32) -> (i32, i32) {
    %c0_i32 = arith.constant 0 : i32
    %c0_i32_0 = arith.constant 0 : i32
    %c0_i32_1 = arith.constant 0 : i32
    return %c0_i32, %c0_i32_0 : i32, i32
  }
  func.func @transform_5(%arg0: i32) -> (i32, i32) {
    %c0_i32 = arith.constant 0 : i32
    %c0_i32_0 = arith.constant 0 : i32
    %c0_i32_1 = arith.constant 0 : i32
    return %c0_i32, %c0_i32_0 : i32, i32
  }
  func.func @transform_6(%arg0: i32) -> (i32, i32) {
    %c0_i32 = arith.constant 0 : i32
    %c0_i32_0 = arith.constant 0 : i32
    %c0_i32_1 = arith.constant 0 : i32
    return %c0_i32, %c0_i32_0 : i32, i32
  }
  func.func @transform_7(%arg0: i32) -> (i32, i32, i32) {
    %c0_i32 = arith.constant 0 : i32
    %c0_i32_0 = arith.constant 0 : i32
    %c0_i32_1 = arith.constant 0 : i32
    return %arg0, %c0_i32, %c0_i32_0 : i32, i32, i32
  }
}

</mosaic_0001>

<llo_original>
// kernel: a_call__.4
$region0: #{a_call__.4}
  #allocation0 [shape = 'u32[]', space=smem, size = 0x4, offset = 0x4, fixed_abs, tag = 'smem constant byte address 0x4 - core index']
  #allocation1 [shape = 'u32[144,128]{1,0:T(1,128)}', space=vmem, size = 0x12000, scoped, tag = 'internal scratch']
  %s0 = inlined_call_operand.vmem [shape: bf16[8,9,12], index: 0, kind: input, shape index: {}]
  %s1 = inlined_call_operand.vmem [shape: bf16[12,16], index: 1, kind: input, shape index: {}]
  %s2 = inlined_call_operand.vmem [shape: bf16[8,16], index: 2, kind: input, shape index: {}]
  %s3 = inlined_call_operand.vmem [shape: f32[1,16], index: 3, kind: input, shape index: {}]
  %s4 = inlined_call_operand.vmem [shape: bf16[8,8,16], index: 4, kind: output, shape index: {}]
  %s5 = sld [smem:[#allocation0]]
  $region49: #{a_call__.4} parent=0
    _
  %s7 = ssub.s32 1, %s5
  %s8 = scalar_select 0, %s7, %s5
  loop: start=0, step=1, limit=4
  $region2: #{a_call__.4} parent=0 // loop_pre_header
    _
  $region3: #{a_call__.4} parent=0 // loop_header
    %s10 = sphi 0, %s14
    %p11 = scmp.ge.s32.totalorder %s10, 4
    %s20 = sphi 0, %s22
    %s23 = sphi 0, %s20
    %s24 = sphi 0, %s23
    %s40 = sphi 0, %s24
    %s44 = sphi 0, %s44
    %s46 = sphi 0, %s44
    %s47 = sphi 0, %s46
    %s61 = sphi 0, %s47
    %s65 = sphi 0, %s65
    %s67 = sphi 0, %s65
    %s68 = sphi 0, %s67
    %s82 = sphi 0, %s68
    %s86 = sphi 0, %s86
    %s88 = sphi 0, %s86
    %s89 = sphi 0, %s88
    %s103 = sphi 0, %s89
    %s109 = sphi 0, %s111
    %s112 = sphi 0, %s109
    %s113 = sphi 0, %s112
    %s129 = sphi 0, %s113
  $region4: #{a_call__.4} parent=0 // loop_header_branch
    %13 = sbr.rel (%p11) target = $region8
  $region5: #{a_call__.4} parent=0 // loop_body
    %s15 = ssub.s32 %s10, 1
    %s16 = ssub.s32 %s10, 2
    %s17 = sadd.s32 %s10, 1
    %s18 = ssub.s32 %s10, %s17
    %p19 = scmp.eq.s32.totalorder %s18, 0
    %s21 = sadd.s32 %s20, 1
    %s22 = scalar_select %p19, %s20, %s21
    %p25 = pneg %p19
    %p26 = scmp.eq.s32.totalorder %s10, 1
    %p27 = por %p25, %p26
    %p28 = scmp.ne.s32.totalorder %s20, %s23
    %p29 = scmp.eq.s32.totalorder %s10, 0
    %p30 = por %p28, %p29
    %p31 = scmp.ne.s32.totalorder %s20, %s23
    %p32 = scmp.eq.s32.totalorder %s15, 1
    %p33 = por %p31, %p32
    %p34 = scmp.ne.s32.totalorder %s23, %s24
    %p35 = scmp.eq.s32.totalorder %s15, 0
    %p36 = por %p34, %p35
    %p37 = scmp.ne.s32.totalorder %s23, %s24
    %p38 = scmp.eq.s32.totalorder %s16, 1
    %p39 = por %p37, %p38
    %p41 = scmp.ne.s32.totalorder %s24, %s40
    %p42 = scmp.eq.s32.totalorder %s16, 0
    %p43 = por %p41, %p42
    %s45 = sadd.s32 %s44, 1
    %p48 = scmp.eq.s32.totalorder %s10, 1
    %p49 = scmp.ne.s32.totalorder %s44, %s46
    %p50 = scmp.eq.s32.totalorder %s10, 0
    %p51 = por %p49, %p50
    %p52 = scmp.ne.s32.totalorder %s44, %s46
    %p53 = scmp.eq.s32.totalorder %s15, 1
    %p54 = por %p52, %p53
    %p55 = scmp.ne.s32.totalorder %s46, %s47
    %p56 = scmp.eq.s32.totalorder %s15, 0
    %p57 = por %p55, %p56
    %p58 = scmp.ne.s32.totalorder %s46, %s47
    %p59 = scmp.eq.s32.totalorder %s16, 1
    %p60 = por %p58, %p59
    %p62 = scmp.ne.s32.totalorder %s47, %s61
    %p63 = scmp.eq.s32.totalorder %s16, 0
    %p64 = por %p62, %p63
    %s66 = sadd.s32 %s65, 1
    %p69 = scmp.eq.s32.totalorder %s10, 1
    %p70 = scmp.ne.s32.totalorder %s65, %s67
    %p71 = scmp.eq.s32.totalorder %s10, 0
    %p72 = por %p70, %p71
    %p73 = scmp.ne.s32.totalorder %s65, %s67
    %p74 = scmp.eq.s32.totalorder %s15, 1
    %p75 = por %p73, %p74
    %p76 = scmp.ne.s32.totalorder %s67, %s68
    %p77 = scmp.eq.s32.totalorder %s15, 0
    %p78 = por %p76, %p77
    %p79 = scmp.ne.s32.totalorder %s67, %s68
    %p80 = scmp.eq.s32.totalorder %s16, 1
    %p81 = por %p79, %p80
    %p83 = scmp.ne.s32.totalorder %s68, %s82
    %p84 = scmp.eq.s32.totalorder %s16, 0
    %p85 = por %p83, %p84
    %s87 = sadd.s32 %s86, 1
    %p90 = scmp.eq.s32.totalorder %s10, 1
    %p91 = scmp.ne.s32.totalorder %s86, %s88
    %p92 = scmp.eq.s32.totalorder %s10, 0
    %p93 = por %p91, %p92
    %p94 = scmp.ne.s32.totalorder %s86, %s88
    %p95 = scmp.eq.s32.totalorder %s15, 1
    %p96 = por %p94, %p95
    %p97 = scmp.ne.s32.totalorder %s88, %s89
    %p98 = scmp.eq.s32.totalorder %s15, 0
    %p99 = por %p97, %p98
    %p100 = scmp.ne.s32.totalorder %s88, %s89
    %p101 = scmp.eq.s32.totalorder %s16, 1
    %p102 = por %p100, %p101
    %p104 = scmp.ne.s32.totalorder %s89, %s103
    %p105 = scmp.eq.s32.totalorder %s16, 0
    %p106 = por %p104, %p105
    %s107 = ssub.s32 %s10, %s17
    %p108 = scmp.eq.s32.totalorder %s107, 0
    %s110 = sadd.s32 %s109, 1
    %s111 = scalar_select %p108, %s109, %s110
    %p114 = pneg %p108
    %p115 = scmp.eq.s32.totalorder %s10, 1
    %p116 = por %p114, %p115
    %p117 = scmp.ne.s32.totalorder %s109, %s112
    %p118 = scmp.eq.s32.totalorder %s10, 0
    %p119 = por %p117, %p118
    %p120 = scmp.ne.s32.totalorder %s109, %s112
    %p121 = scmp.eq.s32.totalorder %s15, 1
    %p122 = por %p120, %p121
    %p123 = scmp.ne.s32.totalorder %s112, %s113
    %p124 = scmp.eq.s32.totalorder %s15, 0
    %p125 = por %p123, %p124
    %p126 = scmp.ne.s32.totalorder %s112, %s113
    %p127 = scmp.eq.s32.totalorder %s16, 1
    %p128 = por %p126, %p127
    %p130 = scmp.ne.s32.totalorder %s113, %s129
    %p131 = scmp.eq.s32.totalorder %s16, 0
    %p132 = por %p130, %p131
    %p133 = scmp.le.s32.totalorder 1, %s10
    %p134 = scmp.lt.s32.totalorder %s10, 3
    %p135 = pnand %p133, %p134
    %p136 = pneg %p135
    // Predicated region
    $region9: #{a_call__.4} parent=5 // pred_check
      _
    $region10: #{a_call__.4} parent=5 // pred_check_branch
      %138 = sbr.rel (%p135) target = $region12
    $region11: #{a_call__.4} parent=5 // pred_region
      %s139 = ssub.s32 %s10, 1
      // Predicated region
      $region13: #{a_call__.4} parent=11 // pred_check
        %p140 = pneg %p57
      $region14: #{a_call__.4} parent=11 // pred_check_branch
        %142 = sbr.rel (%p140) target = $region16
      $region15: #{a_call__.4} parent=11 // pred_region
        _
      $region16: #{a_call__.4} parent=11 // pred_fallthru
        _
      // Predicated region
      $region17: #{a_call__.4} parent=11 // pred_check
        %p143 = pneg %p78
      $region18: #{a_call__.4} parent=11 // pred_check_branch
        %145 = sbr.rel (%p143) target = $region20
      $region19: #{a_call__.4} parent=11 // pred_region
        _
      $region20: #{a_call__.4} parent=11 // pred_fallthru
        _
      // Predicated region
      $region21: #{a_call__.4} parent=11 // pred_check
        %p146 = pneg %p99
      $region22: #{a_call__.4} parent=11 // pred_check_branch
        %148 = sbr.rel (%p146) target = $region24
      $region23: #{a_call__.4} parent=11 // pred_region
        _
      $region24: #{a_call__.4} parent=11 // pred_fallthru
        _
    $region12: #{a_call__.4} parent=5 // pred_fallthru
      _
    %p149 = scmp.lt.s32.totalorder %s10, 2
    // Predicated region
    $region25: #{a_call__.4} parent=5 // pred_check
      %p150 = pneg %p149
    $region26: #{a_call__.4} parent=5 // pred_check_branch
      %152 = sbr.rel (%p150) target = $region28
    $region27: #{a_call__.4} parent=5 // pred_region
      // Predicated region
      $region29: #{a_call__.4} parent=27 // pred_check
        %p153 = pneg %p30
      $region30: #{a_call__.4} parent=27 // pred_check_branch
        %155 = sbr.rel (%p153) target = $region32
      $region31: #{a_call__.4} parent=27 // pred_region
        %s156 = smul.u32 4, %s10
        %p157 = scmp.lt.s32.totalorder %s156, 7
        %s158 = scalar_select %p157, %s156, 7
        %s159 = smul.addr %s158, 2
        %s160 = smul.addr %s159, 4
        %s161 = scalar_lea.vmem %s0, %s160
        %s162 = smul.u32 4, %s10
      $region32: #{a_call__.4} parent=27 // pred_fallthru
        _
    $region28: #{a_call__.4} parent=5 // pred_fallthru
      _
    %p163 = scmp.le.s32.totalorder 1, %s10
    %p164 = scmp.lt.s32.totalorder %s10, 3
    %p165 = pnand %p163, %p164
    %p166 = pneg %p165
    // Predicated region
    $region33: #{a_call__.4} parent=5 // pred_check
      _
    $region34: #{a_call__.4} parent=5 // pred_check_branch
      %168 = sbr.rel (%p165) target = $region36
    $region35: #{a_call__.4} parent=5 // pred_region
      %s169 = ssub.s32 %s10, 1
      %s170 = smul.u32 4, %s15
      %p171 = scmp.lt.s32.totalorder %s170, 7
      %s172 = scalar_select %p171, %s170, 7
      %s173 = smul.addr %s172, 2
      %s174 = smul.addr %s173, 4
      %s175 = scalar_lea.vmem %s0, %s174
      %p176 = pneg %p36
      %p177 = pneg %p33
      %p178 = pneg %p57
      %p179 = pneg %p54
      %p180 = pneg %p78
      %p181 = pneg %p75
      %p182 = pneg %p99
      %p183 = pneg %p96
      %p184 = pneg %p125
      %p185 = pneg %p122
      %s186 = smul.u32 4, %s15
      %p187 = scmp.lt.s32.totalorder %s186, 7
      %s188 = scalar_select %p187, %s186, 7
      %s189 = smul.addr %s188, 4
      %s190 = scalar_lea.vmem %s4, %s189
      %s191 = smul.u32 4, %s15
      %p192 = scmp.lt.s32.totalorder %s191, 7
      %s193 = scalar_select %p192, %s191, 7
      %s194 = smul.addr %s193, 2
      %s195 = smul.addr %s194, 4
      %s196 = scalar_lea.vmem %s0, %s195
      %s197 = smul.u32 4, %s15
      %s198 = smul.u32 4, %s15
      %p199 = scmp.lt.s32.totalorder %s198, 7
      %s200 = scalar_select %p199, %s198, 7
      %s201 = smul.addr %s200, 4
      %s202 = scalar_lea.vmem %s4, %s201
      %s203 = smul.u32 4, %s15
      %v205 = vld [vmem:[%s196] sm:$0xf]
      %v206 = vld [vmem:[%s196 + $0x8] sm:$0xf]
      %v207 = vld [vmem:[%s196 + $0x10] sm:$0xf]
      %v208 = vld [vmem:[%s196 + $0x18] sm:$0xf]
      %v209 = vld [vmem:[%s1] sm:$0xf]
      %v210 = vld [vmem:[%s1 + $0x4] sm:$0x3]
      %v211 = vld [vmem:[%s196 + $0x4] sm:$0x1]
      %v212 = vld [vmem:[%s196 + $0xc] sm:$0x1]
      %v213 = vld [vmem:[%s196 + $0x14] sm:$0x1]
      %v214 = vld [vmem:[%s196 + $0x1c] sm:$0x1]
      %vm215 = vsmask.f32 3328
      %vm216 = vsmask.f32 7440
      %vm217 = vmor %vm215, %vm216
      %v219 = vshrl.u32 %v205, 16
      %v221 = vrot.slane %v219, 4
      %v222 = vshll.u32 %v205, 16
      %v224 = vrot.slane %v222, 5
      %v225 = vor.u32 %v221, %v224
      %v226 = vrot.slane %v225, 4
      %v228 = vshll.u32 %v211, 16
      %v230 = vrot.slane %v228, 5
      %v231 = vsel %vm217, %v226, %v230
      %v233 = vshrl.u32 %v206, 16
      %v235 = vrot.slane %v233, 4
      %v236 = vshll.u32 %v206, 16
      %v238 = vrot.slane %v236, 5
      %v239 = vor.u32 %v235, %v238
      %v240 = vrot.slane %v239, 4
      %v242 = vshll.u32 %v212, 16
      %v244 = vrot.slane %v242, 5
      %v245 = vsel %vm217, %v240, %v244
      %v247 = vshrl.u32 %v207, 16
      %v249 = vrot.slane %v247, 4
      %v250 = vshll.u32 %v207, 16
      %v252 = vrot.slane %v250, 5
      %v253 = vor.u32 %v249, %v252
      %v254 = vrot.slane %v253, 4
      %v256 = vshll.u32 %v213, 16
      %v258 = vrot.slane %v256, 5
      %v259 = vsel %vm217, %v254, %v258
      %v261 = vshrl.u32 %v208, 16
      %v263 = vrot.slane %v261, 4
      %v264 = vshll.u32 %v208, 16
      %v266 = vrot.slane %v264, 5
      %v267 = vor.u32 %v263, %v266
      %v268 = vrot.slane %v267, 4
      %v270 = vshll.u32 %v214, 16
      %v272 = vrot.slane %v270, 5
      %v273 = vsel %vm217, %v268, %v272
      %v274 = vld [vmem:[%s2] sm:$0xf]
      %v275 = vunpack.c.l.b16 %v231
      %v276 = vunpack.c.l.b16 %v245
      %v277 = vunpack.c.l.b16 %v259
      %v278 = vunpack.c.l.b16 %v273
      %v279 = vpack.c.b16 %v276, %v275
      %v280 = vpack.c.b16 %v278, %v277
      %vm281 = vcmask 64512
      %v283 = vsel %vm281, %v279, 0
      %v286 = vsel %vm281, %v280, 0
      %vm288 = vcmask 1043456
      %v290 = vsel %vm288, %v274, 0
      %292 = vmatprep.subr.bf16.mxu0 0
      %293 = vmatpush1.bf16.msra.mxu0 0
      %294 = vmatprep.subr.bf16.mxu0 0
      %295 = vmatpush1.bf16.msra.mxu0 0
      %296 = vmatprep.subr.bf16.mxu0 0
      %297 = vmatpush1.bf16.msra.mxu0 0
      %298 = vmatprep.subr.bf16.mxu0 0
      %299 = vmatpush1.bf16.msra.mxu0 0
      %300 = vmatprep.subr.bf16.mxu0 0
      %301 = vmatpush1.bf16.msra.mxu0 0
      %302 = vmatprep.subr.bf16.mxu0 0
      %303 = vmatpush1.bf16.msra.mxu0 0
      %304 = vmatprep.subr.bf16.mxu0 0
      %305 = vmatpush1.bf16.msra.mxu0 0
      %306 = vmatprep.subr.bf16.mxu0 0
      %307 = vmatpush1.bf16.msra.mxu0 %v290
      %308 = vmatprep.subr.bf16.mxu0 0
      %309 = vmatpush2.bf16.msra.mxu0 0
      %310 = vmatprep.subr.bf16.mxu0 0
      %311 = vmatpush2.bf16.msra.mxu0 0
      %312 = vmatprep.subr.bf16.mxu0 0
      %313 = vmatpush2.bf16.msra.mxu0 0
      %314 = vmatprep.subr.bf16.mxu0 0
      %315 = vmatpush2.bf16.msra.mxu0 0
      %316 = vmatprep.subr.bf16.mxu0 0
      %317 = vmatpush2.bf16.msra.mxu0 0
      %318 = vmatprep.subr.bf16.mxu0 0
      %319 = vmatpush2.bf16.msra.mxu0 0
      %320 = vmatprep.subr.bf16.mxu0 0
      %321 = vmatpush2.bf16.msra.mxu0 0
      %322 = vmatprep.subr.bf16.mxu0 0
      %323 = vmatpush2.bf16.msra.mxu0 0
      %324 = vmatprep.mubr.bf16.mxu0 0
      %325 = vmatmul.mubr.bf16.gmra.mxu0 %v283
      %v326 = vpop.f32.mrf.mxu0
      %v327 = vadd.f32 0.0, %v326
      %v328 = vpop.f32.mrf.mxu0
      %v329 = vpop.f32.mrf.mxu0
      %v330 = vadd.f32 0.0, %v329
      %v331 = vpop.f32.mrf.mxu0
      %332 = vmatprep.mubr.bf16.mxu0 0
      %333 = vmatmul.mubr.bf16.gmra.mxu0 %v286
      %v334 = vpop.f32.mrf.mxu0
      %v335 = vadd.f32 0.0, %v334
      %v336 = vpop.f32.mrf.mxu0
      %v337 = vpop.f32.mrf.mxu0
      %v338 = vadd.f32 0.0, %v337
      %v339 = vpop.f32.mrf.mxu0
      %340 = vdwg.mxu0
      %v345 = vunpack.c.l.b16 %v205
      %v346 = vunpack.c.l.b16 %v206
      %v347 = vunpack.c.l.b16 %v207
      %v348 = vunpack.c.l.b16 %v208
      %v349 = vpack.c.b16 %v346, %v345
      %v350 = vpack.c.b16 %v348, %v347
      %v353 = vunpack.c.l.b16 %v209
      %v354 = vunpack.c.l.b16 %v210
      %v355 = vpack.c.b16 %v354, %v353
      %vm356 = vcmask 97280
      %v358 = vsel %vm356, %v349, 0
      %v361 = vsel %vm356, %v350, 0
      %vm363 = vcmask 1045504
      %v365 = vsel %vm363, %v355, 0
      %367 = vmatprep.subr.bf16.mxu0 0
      %368 = vmatpush1.bf16.msra.mxu0 0
      %369 = vmatprep.subr.bf16.mxu0 0
      %370 = vmatpush1.bf16.msra.mxu0 0
      %371 = vmatprep.subr.bf16.mxu0 0
      %372 = vmatpush1.bf16.msra.mxu0 0
      %373 = vmatprep.subr.bf16.mxu0 0
      %374 = vmatpush1.bf16.msra.mxu0 0
      %375 = vmatprep.subr.bf16.mxu0 0
      %376 = vmatpush1.bf16.msra.mxu0 0
      %377 = vmatprep.subr.bf16.mxu0 0
      %378 = vmatpush1.bf16.msra.mxu0 0
      %379 = vmatprep.subr.bf16.mxu0 0
      %380 = vmatpush1.bf16.msra.mxu0 0
      %381 = vmatprep.subr.bf16.mxu0 0
      %382 = vmatpush1.bf16.msra.mxu0 %v365
      %383 = vmatprep.subr.bf16.mxu0 0
      %384 = vmatpush2.bf16.msra.mxu0 0
      %385 = vmatprep.subr.bf16.mxu0 0
      %386 = vmatpush2.bf16.msra.mxu0 0
      %387 = vmatprep.subr.bf16.mxu0 0
      %388 = vmatpush2.bf16.msra.mxu0 0
      %389 = vmatprep.subr.bf16.mxu0 0
      %390 = vmatpush2.bf16.msra.mxu0 0
      %391 = vmatprep.subr.bf16.mxu0 0
      %392 = vmatpush2.bf16.msra.mxu0 0
      %393 = vmatprep.subr.bf16.mxu0 0
      %394 = vmatpush2.bf16.msra.mxu0 0
      %395 = vmatprep.subr.bf16.mxu0 0
      %396 = vmatpush2.bf16.msra.mxu0 0
      %397 = vmatprep.subr.bf16.mxu0 0
      %398 = vmatpush2.bf16.msra.mxu0 0
      %399 = vmatprep.mubr.bf16.mxu0 0
      %400 = vmatmul.mubr.bf16.gmra.mxu0 %v358
      %v401 = vpop.f32.mrf.mxu0
      %v402 = vadd.f32 %v327, %v401
      %v403 = vpop.f32.mrf.mxu0
      %v404 = vpop.f32.mrf.mxu0
      %v405 = vadd.f32 %v330, %v404
      %v406 = vpop.f32.mrf.mxu0
      %407 = vmatprep.mubr.bf16.mxu0 0
      %408 = vmatmul.mubr.bf16.gmra.mxu0 %v361
      %v409 = vpop.f32.mrf.mxu0
      %v410 = vadd.f32 %v335, %v409
      %v411 = vpop.f32.mrf.mxu0
      %v412 = vpop.f32.mrf.mxu0
      %v413 = vadd.f32 %v338, %v412
      %v414 = vpop.f32.mrf.mxu0
      %415 = vdwg.mxu0
      %v416 = vld [vmem:[%s3] sm:$0x1]
      %v418 = vlaneseq
      %v419 = vshrl.u32 %v418, 7
      %v420 = vsub.s32 0, %v419
      %v421 = vrot.slane %v416, %v420
      %v423 = vadd.f32 %v402, %v421
      %v424 = vadd.f32 %v405, %v421
      %v425 = vadd.f32 %v410, %v421
      %v426 = vadd.f32 %v413, %v421
      %vm427 = vcmp.ge.f32.partialorder %v423, 0.0
      %vm428 = vcmp.ge.f32.partialorder %v424, 0.0
      %vm429 = vcmp.ge.f32.partialorder %v425, 0.0
      %vm430 = vcmp.ge.f32.partialorder %v426, 0.0
      %v431 = vmul.f32 %v423, 0.1
      %v432 = vmul.f32 %v424, 0.1
      %v433 = vmul.f32 %v425, 0.1
      %v434 = vmul.f32 %v426, 0.1
      %v435 = vsel %vm427, %v423, %v431
      %v436 = vsel %vm428, %v424, %v432
      %v437 = vsel %vm429, %v425, %v433
      %v438 = vsel %vm430, %v426, %v434
      %v439 = vpack.c.bf16 %v435, %v435
      %v440 = vpack.c.bf16 %v436, %v436
      %v441 = vpack.c.bf16 %v437, %v437
      %v442 = vpack.c.bf16 %v438, %v438
      %vm443 = vcmask 125952
      %444 = vst.msk [vmem:[%s202] sm:$0xf] %vm443, %v439
      %445 = vst.msk [vmem:[%s202 + $0x4] sm:$0xf] %vm443, %v440
      %446 = vst.msk [vmem:[%s202 + $0x8] sm:$0xf] %vm443, %v441
      %447 = vst.msk [vmem:[%s202 + $0xc] sm:$0xf] %vm443, %v442
      %s448 = smul.u32 4, %s15
      %p449 = scmp.lt.s32.totalorder %s448, 7
      %s450 = scalar_select %p449, %s448, 7
      %s451 = smul.addr %s450, 4
      %s452 = scalar_lea.vmem %s4, %s451
      // Predicated region
      $region37: #{a_call__.4} parent=35 // pred_check
        %p453 = pneg %p122
      $region38: #{a_call__.4} parent=35 // pred_check_branch
        %455 = sbr.rel (%p453) target = $region40
      $region39: #{a_call__.4} parent=35 // pred_region
        %s456 = smul.u32 4, %s15
      $region40: #{a_call__.4} parent=35 // pred_fallthru
        _
    $region36: #{a_call__.4} parent=5 // pred_fallthru
      _
    %p457 = scmp.le.s32.totalorder 2, %s10
    // Predicated region
    $region41: #{a_call__.4} parent=5 // pred_check
      %p458 = pneg %p457
    $region42: #{a_call__.4} parent=5 // pred_check_branch
      %460 = sbr.rel (%p458) target = $region44
    $region43: #{a_call__.4} parent=5 // pred_region
      %s461 = ssub.s32 %s10, 2
      // Predicated region
      $region45: #{a_call__.4} parent=43 // pred_check
        %p462 = pneg %p128
      $region46: #{a_call__.4} parent=43 // pred_check_branch
        %464 = sbr.rel (%p462) target = $region48
      $region47: #{a_call__.4} parent=43 // pred_region
        %s465 = smul.u32 4, %s16
        %p466 = scmp.lt.s32.totalorder %s465, 7
        %s467 = scalar_select %p466, %s465, 7
        %s468 = smul.addr %s467, 4
        %s469 = scalar_lea.vmem %s4, %s468
      $region48: #{a_call__.4} parent=43 // pred_fallthru
        _
    $region44: #{a_call__.4} parent=5 // pred_fallthru
      _
  $region6: #{a_call__.4} parent=0 // loop_footer
    %s14 = sadd.s32 1, %s10
  $region7: #{a_call__.4} parent=0 // loop_footer_branch
    %9 = sbr.rel target = $region3
  $region8: #{a_call__.4} parent=0 // loop_exit
    _

// kernel: a_call__.5
$region0: #{a_call__.5}
  #allocation0 [shape = 'u32[]', space=smem, size = 0x4, offset = 0x4, fixed_abs, tag = 'smem constant byte address 0x4 - core index']
  #allocation1 [shape = 'u32[144,128]{1,0:T(1,128)}', space=vmem, size = 0x12000, scoped, tag = 'internal scratch']
  %s0 = inlined_call_operand.vmem [shape: bf16[8,9,48], index: 0, kind: input, shape index: {}]
  %s1 = inlined_call_operand.vmem [shape: bf16[48,64], index: 1, kind: input, shape index: {}]
  %s2 = inlined_call_operand.vmem [shape: bf16[32,64], index: 2, kind: input, shape index: {}]
  %s3 = inlined_call_operand.vmem [shape: f32[1,64], index: 3, kind: input, shape index: {}]
  %s4 = inlined_call_operand.vmem [shape: bf16[8,8,64], index: 4, kind: output, shape index: {}]
  %s5 = sld [smem:[#allocation0]]
  $region49: #{a_call__.5} parent=0
    _
  %s7 = ssub.s32 1, %s5
  %s8 = scalar_select 0, %s7, %s5
  loop: start=0, step=1, limit=4
  $region2: #{a_call__.5} parent=0 // loop_pre_header
    _
  $region3: #{a_call__.5} parent=0 // loop_header
    %s10 = sphi 0, %s14
    %p11 = scmp.ge.s32.totalorder %s10, 4
    %s20 = sphi 0, %s22
    %s23 = sphi 0, %s20
    %s24 = sphi 0, %s23
    %s40 = sphi 0, %s24
    %s44 = sphi 0, %s44
    %s46 = sphi 0, %s44
    %s47 = sphi 0, %s46
    %s61 = sphi 0, %s47
    %s65 = sphi 0, %s65
    %s67 = sphi 0, %s65
    %s68 = sphi 0, %s67
    %s82 = sphi 0, %s68
    %s86 = sphi 0, %s86
    %s88 = sphi 0, %s86
    %s89 = sphi 0, %s88
    %s103 = sphi 0, %s89
    %s109 = sphi 0, %s111
    %s112 = sphi 0, %s109
    %s113 = sphi 0, %s112
    %s129 = sphi 0, %s113
  $region4: #{a_call__.5} parent=0 // loop_header_branch
    %13 = sbr.rel (%p11) target = $region8
  $region5: #{a_call__.5} parent=0 // loop_body
    %s15 = ssub.s32 %s10, 1
    %s16 = ssub.s32 %s10, 2
    %s17 = sadd.s32 %s10, 1
    %s18 = ssub.s32 %s10, %s17
    %p19 = scmp.eq.s32.totalorder %s18, 0
    %s21 = sadd.s32 %s20, 1
    %s22 = scalar_select %p19, %s20, %s21
    %p25 = pneg %p19
    %p26 = scmp.eq.s32.totalorder %s10, 1
    %p27 = por %p25, %p26
    %p28 = scmp.ne.s32.totalorder %s20, %s23
    %p29 = scmp.eq.s32.totalorder %s10, 0
    %p30 = por %p28, %p29
    %p31 = scmp.ne.s32.totalorder %s20, %s23
    %p32 = scmp.eq.s32.totalorder %s15, 1
    %p33 = por %p31, %p32
    %p34 = scmp.ne.s32.totalorder %s23, %s24
    %p35 = scmp.eq.s32.totalorder %s15, 0
    %p36 = por %p34, %p35
    %p37 = scmp.ne.s32.totalorder %s23, %s24
    %p38 = scmp.eq.s32.totalorder %s16, 1
    %p39 = por %p37, %p38
    %p41 = scmp.ne.s32.totalorder %s24, %s40
    %p42 = scmp.eq.s32.totalorder %s16, 0
    %p43 = por %p41, %p42
    %s45 = sadd.s32 %s44, 1
    %p48 = scmp.eq.s32.totalorder %s10, 1
    %p49 = scmp.ne.s32.totalorder %s44, %s46
    %p50 = scmp.eq.s32.totalorder %s10, 0
    %p51 = por %p49, %p50
    %p52 = scmp.ne.s32.totalorder %s44, %s46
    %p53 = scmp.eq.s32.totalorder %s15, 1
    %p54 = por %p52, %p53
    %p55 = scmp.ne.s32.totalorder %s46, %s47
    %p56 = scmp.eq.s32.totalorder %s15, 0
    %p57 = por %p55, %p56
    %p58 = scmp.ne.s32.totalorder %s46, %s47
    %p59 = scmp.eq.s32.totalorder %s16, 1
    %p60 = por %p58, %p59
    %p62 = scmp.ne.s32.totalorder %s47, %s61
    %p63 = scmp.eq.s32.totalorder %s16, 0
    %p64 = por %p62, %p63
    %s66 = sadd.s32 %s65, 1
    %p69 = scmp.eq.s32.totalorder %s10, 1
    %p70 = scmp.ne.s32.totalorder %s65, %s67
    %p71 = scmp.eq.s32.totalorder %s10, 0
    %p72 = por %p70, %p71
    %p73 = scmp.ne.s32.totalorder %s65, %s67
    %p74 = scmp.eq.s32.totalorder %s15, 1
    %p75 = por %p73, %p74
    %p76 = scmp.ne.s32.totalorder %s67, %s68
    %p77 = scmp.eq.s32.totalorder %s15, 0
    %p78 = por %p76, %p77
    %p79 = scmp.ne.s32.totalorder %s67, %s68
    %p80 = scmp.eq.s32.totalorder %s16, 1
    %p81 = por %p79, %p80
    %p83 = scmp.ne.s32.totalorder %s68, %s82
    %p84 = scmp.eq.s32.totalorder %s16, 0
    %p85 = por %p83, %p84
    %s87 = sadd.s32 %s86, 1
    %p90 = scmp.eq.s32.totalorder %s10, 1
    %p91 = scmp.ne.s32.totalorder %s86, %s88
    %p92 = scmp.eq.s32.totalorder %s10, 0
    %p93 = por %p91, %p92
    %p94 = scmp.ne.s32.totalorder %s86, %s88
    %p95 = scmp.eq.s32.totalorder %s15, 1
    %p96 = por %p94, %p95
    %p97 = scmp.ne.s32.totalorder %s88, %s89
    %p98 = scmp.eq.s32.totalorder %s15, 0
    %p99 = por %p97, %p98
    %p100 = scmp.ne.s32.totalorder %s88, %s89
    %p101 = scmp.eq.s32.totalorder %s16, 1
    %p102 = por %p100, %p101
    %p104 = scmp.ne.s32.totalorder %s89, %s103
    %p105 = scmp.eq.s32.totalorder %s16, 0
    %p106 = por %p104, %p105
    %s107 = ssub.s32 %s10, %s17
    %p108 = scmp.eq.s32.totalorder %s107, 0
    %s110 = sadd.s32 %s109, 1
    %s111 = scalar_select %p108, %s109, %s110
    %p114 = pneg %p108
    %p115 = scmp.eq.s32.totalorder %s10, 1
    %p116 = por %p114, %p115
    %p117 = scmp.ne.s32.totalorder %s109, %s112
    %p118 = scmp.eq.s32.totalorder %s10, 0
    %p119 = por %p117, %p118
    %p120 = scmp.ne.s32.totalorder %s109, %s112
    %p121 = scmp.eq.s32.totalorder %s15, 1
    %p122 = por %p120, %p121
    %p123 = scmp.ne.s32.totalorder %s112, %s113
    %p124 = scmp.eq.s32.totalorder %s15, 0
    %p125 = por %p123, %p124
    %p126 = scmp.ne.s32.totalorder %s112, %s113
    %p127 = scmp.eq.s32.totalorder %s16, 1
    %p128 = por %p126, %p127
    %p130 = scmp.ne.s32.totalorder %s113, %s129
    %p131 = scmp.eq.s32.totalorder %s16, 0
    %p132 = por %p130, %p131
    %p133 = scmp.le.s32.totalorder 1, %s10
    %p134 = scmp.lt.s32.totalorder %s10, 3
    %p135 = pnand %p133, %p134
    %p136 = pneg %p135
    // Predicated region
    $region9: #{a_call__.5} parent=5 // pred_check
      _
    $region10: #{a_call__.5} parent=5 // pred_check_branch
      %138 = sbr.rel (%p135) target = $region12
    $region11: #{a_call__.5} parent=5 // pred_region
      %s139 = ssub.s32 %s10, 1
      // Predicated region
      $region13: #{a_call__.5} parent=11 // pred_check
        %p140 = pneg %p57
      $region14: #{a_call__.5} parent=11 // pred_check_branch
        %142 = sbr.rel (%p140) target = $region16
      $region15: #{a_call__.5} parent=11 // pred_region
        _
      $region16: #{a_call__.5} parent=11 // pred_fallthru
        _
      // Predicated region
      $region17: #{a_call__.5} parent=11 // pred_check
        %p143 = pneg %p78
      $region18: #{a_call__.5} parent=11 // pred_check_branch
        %145 = sbr.rel (%p143) target = $region20
      $region19: #{a_call__.5} parent=11 // pred_region
        _
      $region20: #{a_call__.5} parent=11 // pred_fallthru
        _
      // Predicated region
      $region21: #{a_call__.5} parent=11 // pred_check
        %p146 = pneg %p99
      $region22: #{a_call__.5} parent=11 // pred_check_branch
        %148 = sbr.rel (%p146) target = $region24
      $region23: #{a_call__.5} parent=11 // pred_region
        _
      $region24: #{a_call__.5} parent=11 // pred_fallthru
        _
    $region12: #{a_call__.5} parent=5 // pred_fallthru
      _
    %p149 = scmp.lt.s32.totalorder %s10, 2
    // Predicated region
    $region25: #{a_call__.5} parent=5 // pred_check
      %p150 = pneg %p149
    $region26: #{a_call__.5} parent=5 // pred_check_branch
      %152 = sbr.rel (%p150) target = $region28
    $region27: #{a_call__.5} parent=5 // pred_region
      // Predicated region
      $region29: #{a_call__.5} parent=27 // pred_check
        %p153 = pneg %p30
      $region30: #{a_call__.5} parent=27 // pred_check_branch
        %155 = sbr.rel (%p153) target = $region32
      $region31: #{a_call__.5} parent=27 // pred_region
        %s156 = smul.u32 4, %s10
        %p157 = scmp.lt.s32.totalorder %s156, 7
        %s158 = scalar_select %p157, %s156, 7
        %s159 = smul.addr %s158, 2
        %s160 = smul.addr %s159, 4
        %s161 = scalar_lea.vmem %s0, %s160
        %s162 = smul.u32 4, %s10
      $region32: #{a_call__.5} parent=27 // pred_fallthru
        _
    $region28: #{a_call__.5} parent=5 // pred_fallthru
      _
    %p163 = scmp.le.s32.totalorder 1, %s10
    %p164 = scmp.lt.s32.totalorder %s10, 3
    %p165 = pnand %p163, %p164
    %p166 = pneg %p165
    // Predicated region
    $region33: #{a_call__.5} parent=5 // pred_check
      _
    $region34: #{a_call__.5} parent=5 // pred_check_branch
      %168 = sbr.rel (%p165) target = $region36
    $region35: #{a_call__.5} parent=5 // pred_region
      %s169 = ssub.s32 %s10, 1
      %s170 = smul.u32 4, %s15
      %p171 = scmp.lt.s32.totalorder %s170, 7
      %s172 = scalar_select %p171, %s170, 7
      %s173 = smul.addr %s172, 2
      %s174 = smul.addr %s173, 4
      %s175 = scalar_lea.vmem %s0, %s174
      %p176 = pneg %p36
      %p177 = pneg %p33
      %p178 = pneg %p57
      %p179 = pneg %p54
      %p180 = pneg %p78
      %p181 = pneg %p75
      %p182 = pneg %p99
      %p183 = pneg %p96
      %p184 = pneg %p125
      %p185 = pneg %p122
      %s186 = smul.u32 4, %s15
      %p187 = scmp.lt.s32.totalorder %s186, 7
      %s188 = scalar_select %p187, %s186, 7
      %s189 = smul.addr %s188, 4
      %s190 = scalar_lea.vmem %s4, %s189
      %s191 = smul.u32 4, %s15
      %p192 = scmp.lt.s32.totalorder %s191, 7
      %s193 = scalar_select %p192, %s191, 7
      %s194 = smul.addr %s193, 2
      %s195 = smul.addr %s194, 4
      %s196 = scalar_lea.vmem %s0, %s195
      %s197 = smul.u32 4, %s15
      %s198 = smul.u32 4, %s15
      %p199 = scmp.lt.s32.totalorder %s198, 7
      %s200 = scalar_select %p199, %s198, 7
      %s201 = smul.addr %s200, 4
      %s202 = scalar_lea.vmem %s4, %s201
      %s203 = smul.u32 4, %s15
      %v205 = vld [vmem:[%s196] sm:$0xf]
      %v206 = vld [vmem:[%s196 + $0x8] sm:$0xf]
      %v207 = vld [vmem:[%s196 + $0x10] sm:$0xf]
      %v208 = vld [vmem:[%s196 + $0x18] sm:$0xf]
      %v209 = vld [vmem:[%s1] sm:$0xf]
      %v210 = vld [vmem:[%s1 + $0x4] sm:$0xf]
      %v211 = vld [vmem:[%s1 + $0x8] sm:$0xf]
      %v212 = vld [vmem:[%s1 + $0xc] sm:$0xf]
      %v213 = vld [vmem:[%s1 + $0x10] sm:$0xf]
      %v214 = vld [vmem:[%s1 + $0x14] sm:$0xf]
      %v215 = vld [vmem:[%s196 + $0x4] sm:$0x1]
      %v216 = vld [vmem:[%s196 + $0xc] sm:$0x1]
      %v217 = vld [vmem:[%s196 + $0x14] sm:$0x1]
      %v218 = vld [vmem:[%s196 + $0x1c] sm:$0x1]
      %vm219 = vsmask.f32 3328
      %vm220 = vsmask.f32 7440
      %vm221 = vmor %vm219, %vm220
      %v223 = vshrl.u32 %v205, 16
      %v225 = vrot.slane %v223, 4
      %v226 = vshll.u32 %v205, 16
      %v228 = vrot.slane %v226, 5
      %v229 = vor.u32 %v225, %v228
      %v230 = vrot.slane %v229, 4
      %v232 = vshll.u32 %v215, 16
      %v234 = vrot.slane %v232, 5
      %v235 = vsel %vm221, %v230, %v234
      %v237 = vshrl.u32 %v206, 16
      %v239 = vrot.slane %v237, 4
      %v240 = vshll.u32 %v206, 16
      %v242 = vrot.slane %v240, 5
      %v243 = vor.u32 %v239, %v242
      %v244 = vrot.slane %v243, 4
      %v246 = vshll.u32 %v216, 16
      %v248 = vrot.slane %v246, 5
      %v249 = vsel %vm221, %v244, %v248
      %v251 = vshrl.u32 %v207, 16
      %v253 = vrot.slane %v251, 4
      %v254 = vshll.u32 %v207, 16
      %v256 = vrot.slane %v254, 5
      %v257 = vor.u32 %v253, %v256
      %v258 = vrot.slane %v257, 4
      %v260 = vshll.u32 %v217, 16
      %v262 = vrot.slane %v260, 5
      %v263 = vsel %vm221, %v258, %v262
      %v265 = vshrl.u32 %v208, 16
      %v267 = vrot.slane %v265, 4
      %v268 = vshll.u32 %v208, 16
      %v270 = vrot.slane %v268, 5
      %v271 = vor.u32 %v267, %v270
      %v272 = vrot.slane %v271, 4
      %v274 = vshll.u32 %v218, 16
      %v276 = vrot.slane %v274, 5
      %v277 = vsel %vm221, %v272, %v276
      %v278 = vld [vmem:[%s2] sm:$0xf]
      %v279 = vld [vmem:[%s2 + $0x4] sm:$0xf]
      %v280 = vld [vmem:[%s2 + $0x8] sm:$0xf]
      %v281 = vld [vmem:[%s2 + $0xc] sm:$0xf]
      %v282 = vunpack.c.l.b16 %v235
      %v283 = vunpack.c.l.b16 %v249
      %v284 = vunpack.c.l.b16 %v263
      %v285 = vunpack.c.l.b16 %v277
      %v286 = vpack.c.b16 %v283, %v282
      %v287 = vpack.c.b16 %v285, %v284
      %v292 = vunpack.c.l.b16 %v278
      %v293 = vunpack.c.l.b16 %v279
      %v294 = vunpack.c.l.b16 %v280
      %v295 = vunpack.c.l.b16 %v281
      %v296 = vpack.c.b16 %v293, %v292
      %v297 = vpack.c.b16 %v295, %v294
      %vm300 = vcmask 261120
      %v302 = vsel %vm300, %v286, 0
      %v305 = vsel %vm300, %v287, 0
      %307 = vmatprep.subr.bf16.mxu0 0
      %308 = vmatpush1.bf16.msra.mxu0 0
      %309 = vmatprep.subr.bf16.mxu0 0
      %310 = vmatpush1.bf16.msra.mxu0 0
      %311 = vmatprep.subr.bf16.mxu0 0
      %312 = vmatpush1.bf16.msra.mxu0 0
      %313 = vmatprep.subr.bf16.mxu0 0
      %314 = vmatpush1.bf16.msra.mxu0 0
      %315 = vmatprep.subr.bf16.mxu0 0
      %316 = vmatpush1.bf16.msra.mxu0 0
      %317 = vmatprep.subr.bf16.mxu0 0
      %318 = vmatpush1.bf16.msra.mxu0 0
      %319 = vmatprep.subr.bf16.mxu0 0
      %320 = vmatpush1.bf16.msra.mxu0 %v297
      %321 = vmatprep.subr.bf16.mxu0 0
      %322 = vmatpush1.bf16.msra.mxu0 %v296
      %323 = vmatprep.subr.bf16.mxu0 0
      %324 = vmatpush2.bf16.msra.mxu0 0
      %325 = vmatprep.subr.bf16.mxu0 0
      %326 = vmatpush2.bf16.msra.mxu0 0
      %327 = vmatprep.subr.bf16.mxu0 0
      %328 = vmatpush2.bf16.msra.mxu0 0
      %329 = vmatprep.subr.bf16.mxu0 0
      %330 = vmatpush2.bf16.msra.mxu0 0
      %331 = vmatprep.subr.bf16.mxu0 0
      %332 = vmatpush2.bf16.msra.mxu0 0
      %333 = vmatprep.subr.bf16.mxu0 0
      %334 = vmatpush2.bf16.msra.mxu0 0
      %335 = vmatprep.subr.bf16.mxu0 0
      %336 = vmatpush2.bf16.msra.mxu0 0
      %337 = vmatprep.subr.bf16.mxu0 0
      %338 = vmatpush2.bf16.msra.mxu0 0
      %339 = vmatprep.mubr.bf16.mxu0 0
      %340 = vmatmul.mubr.bf16.gmra.mxu0 %v302
      %v341 = vpop.f32.mrf.mxu0
      %v342 = vadd.f32 0.0, %v341
      %v343 = vpop.f32.mrf.mxu0
      %v344 = vpop.f32.mrf.mxu0
      %v345 = vadd.f32 0.0, %v344
      %v346 = vpop.f32.mrf.mxu0
      %347 = vmatprep.mubr.bf16.mxu0 0
      %348 = vmatmul.mubr.bf16.gmra.mxu0 %v305
      %v349 = vpop.f32.mrf.mxu0
      %v350 = vadd.f32 0.0, %v349
      %v351 = vpop.f32.mrf.mxu0
      %v352 = vpop.f32.mrf.mxu0
      %v353 = vadd.f32 0.0, %v352
      %v354 = vpop.f32.mrf.mxu0
      %355 = vdwg.mxu0
      %v360 = vunpack.c.l.b16 %v205
      %v361 = vunpack.c.l.b16 %v206
      %v362 = vunpack.c.l.b16 %v207
      %v363 = vunpack.c.l.b16 %v208
      %v364 = vpack.c.b16 %v361, %v360
      %v365 = vpack.c.b16 %v363, %v362
      %v372 = vunpack.c.l.b16 %v209
      %v373 = vunpack.c.l.b16 %v210
      %v374 = vunpack.c.l.b16 %v211
      %v375 = vunpack.c.l.b16 %v212
      %v376 = vunpack.c.l.b16 %v213
      %v377 = vunpack.c.l.b16 %v214
      %v378 = vpack.c.b16 %v373, %v372
      %v379 = vpack.c.b16 %v375, %v374
      %v380 = vpack.c.b16 %v377, %v376
      %vm384 = vcmask 392192
      %v386 = vsel %vm384, %v364, 0
      %v389 = vsel %vm384, %v365, 0
      %391 = vmatprep.subr.bf16.mxu0 0
      %392 = vmatpush1.bf16.msra.mxu0 0
      %393 = vmatprep.subr.bf16.mxu0 0
      %394 = vmatpush1.bf16.msra.mxu0 0
      %395 = vmatprep.subr.bf16.mxu0 0
      %396 = vmatpush1.bf16.msra.mxu0 0
      %397 = vmatprep.subr.bf16.mxu0 0
      %398 = vmatpush1.bf16.msra.mxu0 0
      %399 = vmatprep.subr.bf16.mxu0 0
      %400 = vmatpush1.bf16.msra.mxu0 0
      %401 = vmatprep.subr.bf16.mxu0 0
      %402 = vmatpush1.bf16.msra.mxu0 %v380
      %403 = vmatprep.subr.bf16.mxu0 0
      %404 = vmatpush1.bf16.msra.mxu0 %v379
      %405 = vmatprep.subr.bf16.mxu0 0
      %406 = vmatpush1.bf16.msra.mxu0 %v378
      %407 = vmatprep.subr.bf16.mxu0 0
      %408 = vmatpush2.bf16.msra.mxu0 0
      %409 = vmatprep.subr.bf16.mxu0 0
      %410 = vmatpush2.bf16.msra.mxu0 0
      %411 = vmatprep.subr.bf16.mxu0 0
      %412 = vmatpush2.bf16.msra.mxu0 0
      %413 = vmatprep.subr.bf16.mxu0 0
      %414 = vmatpush2.bf16.msra.mxu0 0
      %415 = vmatprep.subr.bf16.mxu0 0
      %416 = vmatpush2.bf16.msra.mxu0 0
      %417 = vmatprep.subr.bf16.mxu0 0
      %418 = vmatpush2.bf16.msra.mxu0 0
      %419 = vmatprep.subr.bf16.mxu0 0
      %420 = vmatpush2.bf16.msra.mxu0 0
      %421 = vmatprep.subr.bf16.mxu0 0
      %422 = vmatpush2.bf16.msra.mxu0 0
      %423 = vmatprep.mubr.bf16.mxu0 0
      %424 = vmatmul.mubr.bf16.gmra.mxu0 %v386
      %v425 = vpop.f32.mrf.mxu0
      %v426 = vadd.f32 %v342, %v425
      %v427 = vpop.f32.mrf.mxu0
      %v428 = vpop.f32.mrf.mxu0
      %v429 = vadd.f32 %v345, %v428
      %v430 = vpop.f32.mrf.mxu0
      %431 = vmatprep.mubr.bf16.mxu0 0
      %432 = vmatmul.mubr.bf16.gmra.mxu0 %v389
      %v433 = vpop.f32.mrf.mxu0
      %v434 = vadd.f32 %v350, %v433
      %v435 = vpop.f32.mrf.mxu0
      %v436 = vpop.f32.mrf.mxu0
      %v437 = vadd.f32 %v353, %v436
      %v438 = vpop.f32.mrf.mxu0
      %439 = vdwg.mxu0
      %v440 = vld [vmem:[%s3] sm:$0x1]
      %v442 = vlaneseq
      %v443 = vshrl.u32 %v442, 7
      %v444 = vsub.s32 0, %v443
      %v445 = vrot.slane %v440, %v444
      %v447 = vadd.f32 %v426, %v445
      %v448 = vadd.f32 %v429, %v445
      %v449 = vadd.f32 %v434, %v445
      %v450 = vadd.f32 %v437, %v445
      %vm451 = vcmp.ge.f32.partialorder %v447, 0.0
      %vm452 = vcmp.ge.f32.partialorder %v448, 0.0
      %vm453 = vcmp.ge.f32.partialorder %v449, 0.0
      %vm454 = vcmp.ge.f32.partialorder %v450, 0.0
      %v455 = vmul.f32 %v447, 0.1
      %v456 = vmul.f32 %v448, 0.1
      %v457 = vmul.f32 %v449, 0.1
      %v458 = vmul.f32 %v450, 0.1
      %v459 = vsel %vm451, %v447, %v455
      %v460 = vsel %vm452, %v448, %v456
      %v461 = vsel %vm453, %v449, %v457
      %v462 = vsel %vm454, %v450, %v458
      %v463 = vpack.c.bf16 %v459, %v459
      %v464 = vpack.c.bf16 %v460, %v460
      %v465 = vpack.c.bf16 %v461, %v461
      %v466 = vpack.c.bf16 %v462, %v462
      %vm467 = vcmask 519168
      %468 = vst.msk [vmem:[%s202] sm:$0xf] %vm467, %v463
      %469 = vst.msk [vmem:[%s202 + $0x4] sm:$0xf] %vm467, %v464
      %470 = vst.msk [vmem:[%s202 + $0x8] sm:$0xf] %vm467, %v465
      %471 = vst.msk [vmem:[%s202 + $0xc] sm:$0xf] %vm467, %v466
      %s472 = smul.u32 4, %s15
      %p473 = scmp.lt.s32.totalorder %s472, 7
      %s474 = scalar_select %p473, %s472, 7
      %s475 = smul.addr %s474, 4
      %s476 = scalar_lea.vmem %s4, %s475
      // Predicated region
      $region37: #{a_call__.5} parent=35 // pred_check
        %p477 = pneg %p122
      $region38: #{a_call__.5} parent=35 // pred_check_branch
        %479 = sbr.rel (%p477) target = $region40
      $region39: #{a_call__.5} parent=35 // pred_region
        %s480 = smul.u32 4, %s15
      $region40: #{a_call__.5} parent=35 // pred_fallthru
        _
    $region36: #{a_call__.5} parent=5 // pred_fallthru
      _
    %p481 = scmp.le.s32.totalorder 2, %s10
    // Predicated region
    $region41: #{a_call__.5} parent=5 // pred_check
      %p482 = pneg %p481
    $region42: #{a_call__.5} parent=5 // pred_check_branch
      %484 = sbr.rel (%p482) target = $region44
    $region43: #{a_call__.5} parent=5 // pred_region
      %s485 = ssub.s32 %s10, 2
      // Predicated region
      $region45: #{a_call__.5} parent=43 // pred_check
        %p486 = pneg %p128
      $region46: #{a_call__.5} parent=43 // pred_check_branch
        %488 = sbr.rel (%p486) target = $region48
      $region47: #{a_call__.5} parent=43 // pred_region
        %s489 = smul.u32 4, %s16
        %p490 = scmp.lt.s32.totalorder %s489, 7
        %s491 = scalar_select %p490, %s489, 7
        %s492 = smul.addr %s491, 4
        %s493 = scalar_lea.vmem %s4, %s492
      $region48: #{a_call__.5} parent=43 // pred_fallthru
        _
    $region44: #{a_call__.5} parent=5 // pred_fallthru
      _
  $region6: #{a_call__.5} parent=0 // loop_footer
    %s14 = sadd.s32 1, %s10
  $region7: #{a_call__.5} parent=0 // loop_footer_branch
    %9 = sbr.rel target = $region3
  $region8: #{a_call__.5} parent=0 // loop_exit
    _

// kernel: a_call__.6
$region0: #{a_call__.6}
  #allocation0 [shape = 'u32[]', space=smem, size = 0x4, offset = 0x4, fixed_abs, tag = 'smem constant byte address 0x4 - core index']
  #allocation1 [shape = 'u32[144,128]{1,0:T(1,128)}', space=vmem, size = 0x12000, scoped, tag = 'internal scratch']
  %s0 = inlined_call_operand.vmem [shape: bf16[8,9,192], index: 0, kind: input, shape index: {}]
  %s1 = inlined_call_operand.vmem [shape: bf16[192,128], index: 1, kind: input, shape index: {}]
  %s2 = inlined_call_operand.vmem [shape: bf16[128,128], index: 2, kind: input, shape index: {}]
  %s3 = inlined_call_operand.vmem [shape: f32[1,128], index: 3, kind: input, shape index: {}]
  %s4 = inlined_call_operand.vmem [shape: bf16[8,8,128], index: 4, kind: output, shape index: {}]
  %s5 = sld [smem:[#allocation0]]
  $region49: #{a_call__.6} parent=0
    _
  %s7 = ssub.s32 1, %s5
  %s8 = scalar_select 0, %s7, %s5
  loop: start=0, step=1, limit=4
  $region2: #{a_call__.6} parent=0 // loop_pre_header
    _
  $region3: #{a_call__.6} parent=0 // loop_header
    %s10 = sphi 0, %s14
    %p11 = scmp.ge.s32.totalorder %s10, 4
    %s20 = sphi 0, %s22
    %s23 = sphi 0, %s20
    %s24 = sphi 0, %s23
    %s40 = sphi 0, %s24
    %s44 = sphi 0, %s44
    %s46 = sphi 0, %s44
    %s47 = sphi 0, %s46
    %s61 = sphi 0, %s47
    %s65 = sphi 0, %s65
    %s67 = sphi 0, %s65
    %s68 = sphi 0, %s67
    %s82 = sphi 0, %s68
    %s86 = sphi 0, %s86
    %s88 = sphi 0, %s86
    %s89 = sphi 0, %s88
    %s103 = sphi 0, %s89
    %s109 = sphi 0, %s111
    %s112 = sphi 0, %s109
    %s113 = sphi 0, %s112
    %s129 = sphi 0, %s113
  $region4: #{a_call__.6} parent=0 // loop_header_branch
    %13 = sbr.rel (%p11) target = $region8
  $region5: #{a_call__.6} parent=0 // loop_body
    %s15 = ssub.s32 %s10, 1
    %s16 = ssub.s32 %s10, 2
    %s17 = sadd.s32 %s10, 1
    %s18 = ssub.s32 %s10, %s17
    %p19 = scmp.eq.s32.totalorder %s18, 0
    %s21 = sadd.s32 %s20, 1
    %s22 = scalar_select %p19, %s20, %s21
    %p25 = pneg %p19
    %p26 = scmp.eq.s32.totalorder %s10, 1
    %p27 = por %p25, %p26
    %p28 = scmp.ne.s32.totalorder %s20, %s23
    %p29 = scmp.eq.s32.totalorder %s10, 0
    %p30 = por %p28, %p29
    %p31 = scmp.ne.s32.totalorder %s20, %s23
    %p32 = scmp.eq.s32.totalorder %s15, 1
    %p33 = por %p31, %p32
    %p34 = scmp.ne.s32.totalorder %s23, %s24
    %p35 = scmp.eq.s32.totalorder %s15, 0
    %p36 = por %p34, %p35
    %p37 = scmp.ne.s32.totalorder %s23, %s24
    %p38 = scmp.eq.s32.totalorder %s16, 1
    %p39 = por %p37, %p38
    %p41 = scmp.ne.s32.totalorder %s24, %s40
    %p42 = scmp.eq.s32.totalorder %s16, 0
    %p43 = por %p41, %p42
    %s45 = sadd.s32 %s44, 1
    %p48 = scmp.eq.s32.totalorder %s10, 1
    %p49 = scmp.ne.s32.totalorder %s44, %s46
    %p50 = scmp.eq.s32.totalorder %s10, 0
    %p51 = por %p49, %p50
    %p52 = scmp.ne.s32.totalorder %s44, %s46
    %p53 = scmp.eq.s32.totalorder %s15, 1
    %p54 = por %p52, %p53
    %p55 = scmp.ne.s32.totalorder %s46, %s47
    %p56 = scmp.eq.s32.totalorder %s15, 0
    %p57 = por %p55, %p56
    %p58 = scmp.ne.s32.totalorder %s46, %s47
    %p59 = scmp.eq.s32.totalorder %s16, 1
    %p60 = por %p58, %p59
    %p62 = scmp.ne.s32.totalorder %s47, %s61
    %p63 = scmp.eq.s32.totalorder %s16, 0
    %p64 = por %p62, %p63
    %s66 = sadd.s32 %s65, 1
    %p69 = scmp.eq.s32.totalorder %s10, 1
    %p70 = scmp.ne.s32.totalorder %s65, %s67
    %p71 = scmp.eq.s32.totalorder %s10, 0
    %p72 = por %p70, %p71
    %p73 = scmp.ne.s32.totalorder %s65, %s67
    %p74 = scmp.eq.s32.totalorder %s15, 1
    %p75 = por %p73, %p74
    %p76 = scmp.ne.s32.totalorder %s67, %s68
    %p77 = scmp.eq.s32.totalorder %s15, 0
    %p78 = por %p76, %p77
    %p79 = scmp.ne.s32.totalorder %s67, %s68
    %p80 = scmp.eq.s32.totalorder %s16, 1
    %p81 = por %p79, %p80
    %p83 = scmp.ne.s32.totalorder %s68, %s82
    %p84 = scmp.eq.s32.totalorder %s16, 0
    %p85 = por %p83, %p84
    %s87 = sadd.s32 %s86, 1
    %p90 = scmp.eq.s32.totalorder %s10, 1
    %p91 = scmp.ne.s32.totalorder %s86, %s88
    %p92 = scmp.eq.s32.totalorder %s10, 0
    %p93 = por %p91, %p92
    %p94 = scmp.ne.s32.totalorder %s86, %s88
    %p95 = scmp.eq.s32.totalorder %s15, 1
    %p96 = por %p94, %p95
    %p97 = scmp.ne.s32.totalorder %s88, %s89
    %p98 = scmp.eq.s32.totalorder %s15, 0
    %p99 = por %p97, %p98
    %p100 = scmp.ne.s32.totalorder %s88, %s89
    %p101 = scmp.eq.s32.totalorder %s16, 1
    %p102 = por %p100, %p101
    %p104 = scmp.ne.s32.totalorder %s89, %s103
    %p105 = scmp.eq.s32.totalorder %s16, 0
    %p106 = por %p104, %p105
    %s107 = ssub.s32 %s10, %s17
    %p108 = scmp.eq.s32.totalorder %s107, 0
    %s110 = sadd.s32 %s109, 1
    %s111 = scalar_select %p108, %s109, %s110
    %p114 = pneg %p108
    %p115 = scmp.eq.s32.totalorder %s10, 1
    %p116 = por %p114, %p115
    %p117 = scmp.ne.s32.totalorder %s109, %s112
    %p118 = scmp.eq.s32.totalorder %s10, 0
    %p119 = por %p117, %p118
    %p120 = scmp.ne.s32.totalorder %s109, %s112
    %p121 = scmp.eq.s32.totalorder %s15, 1
    %p122 = por %p120, %p121
    %p123 = scmp.ne.s32.totalorder %s112, %s113
    %p124 = scmp.eq.s32.totalorder %s15, 0
    %p125 = por %p123, %p124
    %p126 = scmp.ne.s32.totalorder %s112, %s113
    %p127 = scmp.eq.s32.totalorder %s16, 1
    %p128 = por %p126, %p127
    %p130 = scmp.ne.s32.totalorder %s113, %s129
    %p131 = scmp.eq.s32.totalorder %s16, 0
    %p132 = por %p130, %p131
    %p133 = scmp.le.s32.totalorder 1, %s10
    %p134 = scmp.lt.s32.totalorder %s10, 3
    %p135 = pnand %p133, %p134
    %p136 = pneg %p135
    // Predicated region
    $region9: #{a_call__.6} parent=5 // pred_check
      _
    $region10: #{a_call__.6} parent=5 // pred_check_branch
      %138 = sbr.rel (%p135) target = $region12
    $region11: #{a_call__.6} parent=5 // pred_region
      %s139 = ssub.s32 %s10, 1
      // Predicated region
      $region13: #{a_call__.6} parent=11 // pred_check
        %p140 = pneg %p57
      $region14: #{a_call__.6} parent=11 // pred_check_branch
        %142 = sbr.rel (%p140) target = $region16
      $region15: #{a_call__.6} parent=11 // pred_region
        _
      $region16: #{a_call__.6} parent=11 // pred_fallthru
        _
      // Predicated region
      $region17: #{a_call__.6} parent=11 // pred_check
        %p143 = pneg %p78
      $region18: #{a_call__.6} parent=11 // pred_check_branch
        %145 = sbr.rel (%p143) target = $region20
      $region19: #{a_call__.6} parent=11 // pred_region
        _
      $region20: #{a_call__.6} parent=11 // pred_fallthru
        _
      // Predicated region
      $region21: #{a_call__.6} parent=11 // pred_check
        %p146 = pneg %p99
      $region22: #{a_call__.6} parent=11 // pred_check_branch
        %148 = sbr.rel (%p146) target = $region24
      $region23: #{a_call__.6} parent=11 // pred_region
        _
      $region24: #{a_call__.6} parent=11 // pred_fallthru
        _
    $region12: #{a_call__.6} parent=5 // pred_fallthru
      _
    %p149 = scmp.lt.s32.totalorder %s10, 2
    // Predicated region
    $region25: #{a_call__.6} parent=5 // pred_check
      %p150 = pneg %p149
    $region26: #{a_call__.6} parent=5 // pred_check_branch
      %152 = sbr.rel (%p150) target = $region28
    $region27: #{a_call__.6} parent=5 // pred_region
      // Predicated region
      $region29: #{a_call__.6} parent=27 // pred_check
        %p153 = pneg %p30
      $region30: #{a_call__.6} parent=27 // pred_check_branch
        %155 = sbr.rel (%p153) target = $region32
      $region31: #{a_call__.6} parent=27 // pred_region
        %s156 = smul.u32 4, %s10
        %p157 = scmp.lt.s32.totalorder %s156, 7
        %s158 = scalar_select %p157, %s156, 7
        %s159 = smul.addr %s158, 4
        %s160 = smul.addr %s159, 4
        %s161 = scalar_lea.vmem %s0, %s160
        %s162 = smul.u32 4, %s10
      $region32: #{a_call__.6} parent=27 // pred_fallthru
        _
    $region28: #{a_call__.6} parent=5 // pred_fallthru
      _
    %p163 = scmp.le.s32.totalorder 1, %s10
    %p164 = scmp.lt.s32.totalorder %s10, 3
    %p165 = pnand %p163, %p164
    %p166 = pneg %p165
    // Predicated region
    $region33: #{a_call__.6} parent=5 // pred_check
      _
    $region34: #{a_call__.6} parent=5 // pred_check_branch
      %168 = sbr.rel (%p165) target = $region36
    $region35: #{a_call__.6} parent=5 // pred_region
      %s169 = ssub.s32 %s10, 1
      %s170 = smul.u32 4, %s15
      %p171 = scmp.lt.s32.totalorder %s170, 7
      %s172 = scalar_select %p171, %s170, 7
      %s173 = smul.addr %s172, 4
      %s174 = smul.addr %s173, 4
      %s175 = scalar_lea.vmem %s0, %s174
      %p176 = pneg %p36
      %p177 = pneg %p33
      %p178 = pneg %p57
      %p179 = pneg %p54
      %p180 = pneg %p78
      %p181 = pneg %p75
      %p182 = pneg %p99
      %p183 = pneg %p96
      %p184 = pneg %p125
      %p185 = pneg %p122
      %s186 = smul.u32 4, %s15
      %p187 = scmp.lt.s32.totalorder %s186, 7
      %s188 = scalar_select %p187, %s186, 7
      %s189 = smul.addr %s188, 4
      %s190 = scalar_lea.vmem %s4, %s189
      %s191 = smul.u32 4, %s15
      %p192 = scmp.lt.s32.totalorder %s191, 7
      %s193 = scalar_select %p192, %s191, 7
      %s194 = smul.addr %s193, 4
      %s195 = smul.addr %s194, 4
      %s196 = scalar_lea.vmem %s0, %s195
      %s197 = smul.u32 4, %s15
      %s198 = smul.u32 4, %s15
      %p199 = scmp.lt.s32.totalorder %s198, 7
      %s200 = scalar_select %p199, %s198, 7
      %s201 = smul.addr %s200, 4
      %s202 = scalar_lea.vmem %s4, %s201
      %s203 = smul.u32 4, %s15
      %v205 = vld [vmem:[%s196] sm:$0xff]
      %v206 = vld [vmem:[%s196 + $0x10] sm:$0xff]
      %v207 = vld [vmem:[%s196 + $0x20] sm:$0xff]
      %v208 = vld [vmem:[%s196 + $0x30] sm:$0xff]
      %v209 = vld [vmem:[%s1] sm:$0xf]
      %v210 = vld [vmem:[%s1 + $0x4] sm:$0xf]
      %v211 = vld [vmem:[%s1 + $0x8] sm:$0xf]
      %v212 = vld [vmem:[%s1 + $0xc] sm:$0xf]
      %v213 = vld [vmem:[%s1 + $0x10] sm:$0xf]
      %v214 = vld [vmem:[%s1 + $0x14] sm:$0xf]
      %v215 = vld [vmem:[%s1 + $0x18] sm:$0xf]
      %v216 = vld [vmem:[%s1 + $0x1c] sm:$0xf]
      %v217 = vld [vmem:[%s1 + $0x20] sm:$0xf]
      %v218 = vld [vmem:[%s1 + $0x24] sm:$0xf]
      %v219 = vld [vmem:[%s1 + $0x28] sm:$0xf]
      %v220 = vld [vmem:[%s1 + $0x2c] sm:$0xf]
      %v221 = vld [vmem:[%s1 + $0x30] sm:$0xf]
      %v222 = vld [vmem:[%s1 + $0x34] sm:$0xf]
      %v223 = vld [vmem:[%s1 + $0x38] sm:$0xf]
      %v224 = vld [vmem:[%s1 + $0x3c] sm:$0xf]
      %v225 = vld [vmem:[%s1 + $0x40] sm:$0xf]
      %v226 = vld [vmem:[%s1 + $0x44] sm:$0xf]
      %v227 = vld [vmem:[%s1 + $0x48] sm:$0xf]
      %v228 = vld [vmem:[%s1 + $0x4c] sm:$0xf]
      %v229 = vld [vmem:[%s1 + $0x50] sm:$0xf]
      %v230 = vld [vmem:[%s1 + $0x54] sm:$0xf]
      %v231 = vld [vmem:[%s1 + $0x58] sm:$0xf]
      %v232 = vld [vmem:[%s1 + $0x5c] sm:$0xf]
      %v233 = vld [vmem:[%s196] sm:$0xf]
      %v234 = vld [vmem:[%s196 + $0x8] sm:$0x1]
      %v235 = vld [vmem:[%s196 + $0x10] sm:$0xf]
      %v236 = vld [vmem:[%s196 + $0x18] sm:$0x1]
      %v237 = vld [vmem:[%s196 + $0x20] sm:$0xf]
      %v238 = vld [vmem:[%s196 + $0x28] sm:$0x1]
      %v239 = vld [vmem:[%s196 + $0x30] sm:$0xf]
      %v240 = vld [vmem:[%s196 + $0x38] sm:$0x1]
      %vm241 = vsmask.f32 3328
      %vm242 = vsmask.f32 7440
      %vm243 = vmor %vm241, %vm242
      %v245 = vshrl.u32 %v233, 16
      %v247 = vrot.slane %v245, 4
      %v248 = vshll.u32 %v233, 16
      %v250 = vrot.slane %v248, 5
      %v251 = vor.u32 %v247, %v250
      %v252 = vrot.slane %v251, 4
      %v254 = vshll.u32 %v234, 16
      %v256 = vrot.slane %v254, 5
      %v257 = vsel %vm243, %v252, %v256
      %v259 = vshrl.u32 %v235, 16
      %v261 = vrot.slane %v259, 4
      %v262 = vshll.u32 %v235, 16
      %v264 = vrot.slane %v262, 5
      %v265 = vor.u32 %v261, %v264
      %v266 = vrot.slane %v265, 4
      %v268 = vshll.u32 %v236, 16
      %v270 = vrot.slane %v268, 5
      %v271 = vsel %vm243, %v266, %v270
      %v273 = vshrl.u32 %v237, 16
      %v275 = vrot.slane %v273, 4
      %v276 = vshll.u32 %v237, 16
      %v278 = vrot.slane %v276, 5
      %v279 = vor.u32 %v275, %v278
      %v280 = vrot.slane %v279, 4
      %v282 = vshll.u32 %v238, 16
      %v284 = vrot.slane %v282, 5
      %v285 = vsel %vm243, %v280, %v284
      %v287 = vshrl.u32 %v239, 16
      %v289 = vrot.slane %v287, 4
      %v290 = vshll.u32 %v239, 16
      %v292 = vrot.slane %v290, 5
      %v293 = vor.u32 %v289, %v292
      %v294 = vrot.slane %v293, 4
      %v296 = vshll.u32 %v240, 16
      %v298 = vrot.slane %v296, 5
      %v299 = vsel %vm243, %v294, %v298
      %v300 = vld [vmem:[%s2] sm:$0xf]
      %v301 = vld [vmem:[%s2 + $0x4] sm:$0xf]
      %v302 = vld [vmem:[%s2 + $0x8] sm:$0xf]
      %v303 = vld [vmem:[%s2 + $0xc] sm:$0xf]
      %v304 = vld [vmem:[%s2 + $0x10] sm:$0xf]
      %v305 = vld [vmem:[%s2 + $0x14] sm:$0xf]
      %v306 = vld [vmem:[%s2 + $0x18] sm:$0xf]
      %v307 = vld [vmem:[%s2 + $0x1c] sm:$0xf]
      %v308 = vld [vmem:[%s2 + $0x20] sm:$0xf]
      %v309 = vld [vmem:[%s2 + $0x24] sm:$0xf]
      %v310 = vld [vmem:[%s2 + $0x28] sm:$0xf]
      %v311 = vld [vmem:[%s2 + $0x2c] sm:$0xf]
      %v312 = vld [vmem:[%s2 + $0x30] sm:$0xf]
      %v313 = vld [vmem:[%s2 + $0x34] sm:$0xf]
      %v314 = vld [vmem:[%s2 + $0x38] sm:$0xf]
      %v315 = vld [vmem:[%s2 + $0x3c] sm:$0xf]
      %v316 = vunpack.c.l.b16 %v257
      %v317 = vunpack.c.l.b16 %v271
      %v318 = vunpack.c.l.b16 %v285
      %v319 = vunpack.c.l.b16 %v299
      %v320 = vpack.c.b16 %v317, %v316
      %v321 = vpack.c.b16 %v319, %v318
      %v340 = vunpack.c.l.b16 %v300
      %v341 = vunpack.c.l.b16 %v301
      %v342 = vunpack.c.l.b16 %v302
      %v343 = vunpack.c.l.b16 %v303
      %v344 = vunpack.c.l.b16 %v304
      %v345 = vunpack.c.l.b16 %v305
      %v346 = vunpack.c.l.b16 %v306
      %v347 = vunpack.c.l.b16 %v307
      %v348 = vunpack.c.l.b16 %v308
      %v349 = vunpack.c.l.b16 %v309
      %v350 = vunpack.c.l.b16 %v310
      %v351 = vunpack.c.l.b16 %v311
      %v352 = vunpack.c.l.b16 %v312
      %v353 = vunpack.c.l.b16 %v313
      %v354 = vunpack.c.l.b16 %v314
      %v355 = vunpack.c.l.b16 %v315
      %v356 = vpack.c.b16 %v341, %v340
      %v357 = vpack.c.b16 %v343, %v342
      %v358 = vpack.c.b16 %v345, %v344
      %v359 = vpack.c.b16 %v347, %v346
      %v360 = vpack.c.b16 %v349, %v348
      %v361 = vpack.c.b16 %v351, %v350
      %v362 = vpack.c.b16 %v353, %v352
      %v363 = vpack.c.b16 %v355, %v354
      %372 = vmatprep.subr.bf16.mxu0 0
      %373 = vmatpush1.bf16.msra.mxu0 %v363
      %374 = vmatprep.subr.bf16.mxu0 0
      %375 = vmatpush1.bf16.msra.mxu0 %v362
      %376 = vmatprep.subr.bf16.mxu0 0
      %377 = vmatpush1.bf16.msra.mxu0 %v361
      %378 = vmatprep.subr.bf16.mxu0 0
      %379 = vmatpush1.bf16.msra.mxu0 %v360
      %380 = vmatprep.subr.bf16.mxu0 0
      %381 = vmatpush1.bf16.msra.mxu0 %v359
      %382 = vmatprep.subr.bf16.mxu0 0
      %383 = vmatpush1.bf16.msra.mxu0 %v358
      %384 = vmatprep.subr.bf16.mxu0 0
      %385 = vmatpush1.bf16.msra.mxu0 %v357
      %386 = vmatprep.subr.bf16.mxu0 0
      %387 = vmatpush1.bf16.msra.mxu0 %v356
      %388 = vmatprep.subr.bf16.mxu0 0
      %389 = vmatpush2.bf16.msra.mxu0 0
      %390 = vmatprep.subr.bf16.mxu0 0
      %391 = vmatpush2.bf16.msra.mxu0 0
      %392 = vmatprep.subr.bf16.mxu0 0
      %393 = vmatpush2.bf16.msra.mxu0 0
      %394 = vmatprep.subr.bf16.mxu0 0
      %395 = vmatpush2.bf16.msra.mxu0 0
      %396 = vmatprep.subr.bf16.mxu0 0
      %397 = vmatpush2.bf16.msra.mxu0 0
      %398 = vmatprep.subr.bf16.mxu0 0
      %399 = vmatpush2.bf16.msra.mxu0 0
      %400 = vmatprep.subr.bf16.mxu0 0
      %401 = vmatpush2.bf16.msra.mxu0 0
      %402 = vmatprep.subr.bf16.mxu0 0
      %403 = vmatpush2.bf16.msra.mxu0 0
      %404 = vmatprep.mubr.bf16.mxu0 0
      %405 = vmatmul.mubr.bf16.gmra.mxu0 %v320
      %v406 = vpop.f32.mrf.mxu0
      %v407 = vadd.f32 0.0, %v406
      %v408 = vpop.f32.mrf.mxu0
      %v409 = vpop.f32.mrf.mxu0
      %v410 = vadd.f32 0.0, %v409
      %v411 = vpop.f32.mrf.mxu0
      %412 = vmatprep.mubr.bf16.mxu0 0
      %413 = vmatmul.mubr.bf16.gmra.mxu0 %v321
      %v414 = vpop.f32.mrf.mxu0
      %v415 = vadd.f32 0.0, %v414
      %v416 = vpop.f32.mrf.mxu0
      %v417 = vpop.f32.mrf.mxu0
      %v418 = vadd.f32 0.0, %v417
      %v419 = vpop.f32.mrf.mxu0
      %420 = vdwg.mxu0
      %v425 = vunpack.c.l.b16 %v205
      %v426 = vunpack.c.h.b16 %v205
      %v427 = vunpack.c.l.b16 %v206
      %v428 = vunpack.c.h.b16 %v206
      %v429 = vunpack.c.l.b16 %v207
      %v430 = vunpack.c.h.b16 %v207
      %v431 = vunpack.c.l.b16 %v208
      %v432 = vunpack.c.h.b16 %v208
      %v433 = vpack.c.b16 %v427, %v425
      %v434 = vpack.c.b16 %v428, %v426
      %v435 = vpack.c.b16 %v431, %v429
      %v436 = vpack.c.b16 %v432, %v430
      %v463 = vunpack.c.l.b16 %v209
      %v464 = vunpack.c.l.b16 %v210
      %v465 = vunpack.c.l.b16 %v211
      %v466 = vunpack.c.l.b16 %v212
      %v467 = vunpack.c.l.b16 %v213
      %v468 = vunpack.c.l.b16 %v214
      %v469 = vunpack.c.l.b16 %v215
      %v470 = vunpack.c.l.b16 %v216
      %v471 = vunpack.c.l.b16 %v217
      %v472 = vunpack.c.l.b16 %v218
      %v473 = vunpack.c.l.b16 %v219
      %v474 = vunpack.c.l.b16 %v220
      %v475 = vunpack.c.l.b16 %v221
      %v476 = vunpack.c.l.b16 %v222
      %v477 = vunpack.c.l.b16 %v223
      %v478 = vunpack.c.l.b16 %v224
      %v479 = vunpack.c.l.b16 %v225
      %v480 = vunpack.c.l.b16 %v226
      %v481 = vunpack.c.l.b16 %v227
      %v482 = vunpack.c.l.b16 %v228
      %v483 = vunpack.c.l.b16 %v229
      %v484 = vunpack.c.l.b16 %v230
      %v485 = vunpack.c.l.b16 %v231
      %v486 = vunpack.c.l.b16 %v232
      %v487 = vpack.c.b16 %v464, %v463
      %v488 = vpack.c.b16 %v466, %v465
      %v489 = vpack.c.b16 %v468, %v467
      %v490 = vpack.c.b16 %v470, %v469
      %v491 = vpack.c.b16 %v472, %v471
      %v492 = vpack.c.b16 %v474, %v473
      %v493 = vpack.c.b16 %v476, %v475
      %v494 = vpack.c.b16 %v478, %v477
      %v495 = vpack.c.b16 %v480, %v479
      %v496 = vpack.c.b16 %v482, %v481
      %v497 = vpack.c.b16 %v484, %v483
      %v498 = vpack.c.b16 %v486, %v485
      %vm511 = vcmask 523264
      %v513 = vsel %vm511, %v434, 0
      %v516 = vsel %vm511, %v436, 0
      %518 = vmatprep.subr.bf16.mxu0 0
      %519 = vmatpush1.bf16.msra.mxu0 %v494
      %520 = vmatprep.subr.bf16.mxu0 0
      %521 = vmatpush1.bf16.msra.mxu0 %v493
      %522 = vmatprep.subr.bf16.mxu0 0
      %523 = vmatpush1.bf16.msra.mxu0 %v492
      %524 = vmatprep.subr.bf16.mxu0 0
      %525 = vmatpush1.bf16.msra.mxu0 %v491
      %526 = vmatprep.subr.bf16.mxu0 0
      %527 = vmatpush1.bf16.msra.mxu0 %v490
      %528 = vmatprep.subr.bf16.mxu0 0
      %529 = vmatpush1.bf16.msra.mxu0 %v489
      %530 = vmatprep.subr.bf16.mxu0 0
      %531 = vmatpush1.bf16.msra.mxu0 %v488
      %532 = vmatprep.subr.bf16.mxu0 0
      %533 = vmatpush1.bf16.msra.mxu0 %v487
      %534 = vmatprep.subr.bf16.mxu0 0
      %535 = vmatpush2.bf16.msra.mxu0 0
      %536 = vmatprep.subr.bf16.mxu0 0
      %537 = vmatpush2.bf16.msra.mxu0 0
      %538 = vmatprep.subr.bf16.mxu0 0
      %539 = vmatpush2.bf16.msra.mxu0 0
      %540 = vmatprep.subr.bf16.mxu0 0
      %541 = vmatpush2.bf16.msra.mxu0 0
      %542 = vmatprep.subr.bf16.mxu0 0
      %543 = vmatpush2.bf16.msra.mxu0 %v498
      %544 = vmatprep.subr.bf16.mxu0 0
      %545 = vmatpush2.bf16.msra.mxu0 %v497
      %546 = vmatprep.subr.bf16.mxu0 0
      %547 = vmatpush2.bf16.msra.mxu0 %v496
      %548 = vmatprep.subr.bf16.mxu0 0
      %549 = vmatpush2.bf16.msra.mxu0 %v495
      %550 = vmatprep.mubr.bf16.mxu0 %v513
      %551 = vmatmul.mubr.bf16.gmra.mxu0 %v433
      %v552 = vpop.f32.mrf.mxu0
      %v553 = vadd.f32 %v407, %v552
      %v554 = vpop.f32.mrf.mxu0
      %v555 = vpop.f32.mrf.mxu0
      %v556 = vadd.f32 %v410, %v555
      %v557 = vpop.f32.mrf.mxu0
      %558 = vmatprep.mubr.bf16.mxu0 %v516
      %559 = vmatmul.mubr.bf16.gmra.mxu0 %v435
      %v560 = vpop.f32.mrf.mxu0
      %v561 = vadd.f32 %v415, %v560
      %v562 = vpop.f32.mrf.mxu0
      %v563 = vpop.f32.mrf.mxu0
      %v564 = vadd.f32 %v418, %v563
      %v565 = vpop.f32.mrf.mxu0
      %566 = vdwg.mxu0
      %v567 = vld [vmem:[%s3] sm:$0x1]
      %v569 = vlaneseq
      %v570 = vshrl.u32 %v569, 7
      %v571 = vsub.s32 0, %v570
      %v572 = vrot.slane %v567, %v571
      %v574 = vadd.f32 %v553, %v572
      %v575 = vadd.f32 %v556, %v572
      %v576 = vadd.f32 %v561, %v572
      %v577 = vadd.f32 %v564, %v572
      %vm578 = vcmp.ge.f32.partialorder %v574, 0.0
      %vm579 = vcmp.ge.f32.partialorder %v575, 0.0
      %vm580 = vcmp.ge.f32.partialorder %v576, 0.0
      %vm581 = vcmp.ge.f32.partialorder %v577, 0.0
      %v582 = vmul.f32 %v574, 0.1
      %v583 = vmul.f32 %v575, 0.1
      %v584 = vmul.f32 %v576, 0.1
      %v585 = vmul.f32 %v577, 0.1
      %v586 = vsel %vm578, %v574, %v582
      %v587 = vsel %vm579, %v575, %v583
      %v588 = vsel %vm580, %v576, %v584
      %v589 = vsel %vm581, %v577, %v585
      %v590 = vpack.c.bf16 %v586, %v586
      %v591 = vpack.c.bf16 %v587, %v587
      %v592 = vpack.c.bf16 %v588, %v588
      %v593 = vpack.c.bf16 %v589, %v589
      %594 = vst [vmem:[%s202] sm:$0xf] %v590
      %595 = vst [vmem:[%s202 + $0x4] sm:$0xf] %v591
      %596 = vst [vmem:[%s202 + $0x8] sm:$0xf] %v592
      %597 = vst [vmem:[%s202 + $0xc] sm:$0xf] %v593
      %s598 = smul.u32 4, %s15
      %p599 = scmp.lt.s32.totalorder %s598, 7
      %s600 = scalar_select %p599, %s598, 7
      %s601 = smul.addr %s600, 4
      %s602 = scalar_lea.vmem %s4, %s601
      // Predicated region
      $region37: #{a_call__.6} parent=35 // pred_check
        %p603 = pneg %p122
      $region38: #{a_call__.6} parent=35 // pred_check_branch
        %605 = sbr.rel (%p603) target = $region40
      $region39: #{a_call__.6} parent=35 // pred_region
        %s606 = smul.u32 4, %s15
      $region40: #{a_call__.6} parent=35 // pred_fallthru
        _
    $region36: #{a_call__.6} parent=5 // pred_fallthru
      _
    %p607 = scmp.le.s32.totalorder 2, %s10
    // Predicated region
    $region41: #{a_call__.6} parent=5 // pred_check
      %p608 = pneg %p607
    $region42: #{a_call__.6} parent=5 // pred_check_branch
      %610 = sbr.rel (%p608) target = $region44
    $region43: #{a_call__.6} parent=5 // pred_region
      %s611 = ssub.s32 %s10, 2
      // Predicated region
      $region45: #{a_call__.6} parent=43 // pred_check
        %p612 = pneg %p128
      $region46: #{a_call__.6} parent=43 // pred_check_branch
        %614 = sbr.rel (%p612) target = $region48
      $region47: #{a_call__.6} parent=43 // pred_region
        %s615 = smul.u32 4, %s16
        %p616 = scmp.lt.s32.totalorder %s615, 7
        %s617 = scalar_select %p616, %s615, 7
        %s618 = smul.addr %s617, 4
        %s619 = scalar_lea.vmem %s4, %s618
      $region48: #{a_call__.6} parent=43 // pred_fallthru
        _
    $region44: #{a_call__.6} parent=5 // pred_fallthru
      _
  $region6: #{a_call__.6} parent=0 // loop_footer
    %s14 = sadd.s32 1, %s10
  $region7: #{a_call__.6} parent=0 // loop_footer_branch
    %9 = sbr.rel target = $region3
  $region8: #{a_call__.6} parent=0 // loop_exit
    _

// kernel: a_call__.7
$region0: #{a_call__.7}
  #allocation0 [shape = 'u32[]', space=smem, size = 0x4, offset = 0x4, fixed_abs, tag = 'smem constant byte address 0x4 - core index']
  #allocation1 [shape = 'u32[144,128]{1,0:T(1,128)}', space=vmem, size = 0x12000, scoped, tag = 'internal scratch']
  %s0 = inlined_call_operand.vmem [shape: bf16[8,12,128], index: 0, kind: input, shape index: {}]
  %s1 = inlined_call_operand.vmem [shape: bf16[128,128], index: 1, kind: input, shape index: {}]
  %s2 = inlined_call_operand.vmem [shape: bf16[128,128], index: 2, kind: input, shape index: {}]
  %s3 = inlined_call_operand.vmem [shape: bf16[128,128], index: 3, kind: input, shape index: {}]
  %s4 = inlined_call_operand.vmem [shape: bf16[128,128], index: 4, kind: input, shape index: {}]
  %s5 = inlined_call_operand.vmem [shape: bf16[128,128], index: 5, kind: input, shape index: {}]
  %s6 = inlined_call_operand.vmem [shape: f32[1,128], index: 6, kind: input, shape index: {}]
  %s7 = inlined_call_operand.vmem [shape: bf16[8,8,128], index: 7, kind: output, shape index: {}]
  %s8 = sld [smem:[#allocation0]]
  $region61: #{a_call__.7} parent=0
    _
  %s10 = ssub.s32 1, %s8
  %s11 = scalar_select 0, %s10, %s8
  loop: start=0, step=1, limit=4
  $region2: #{a_call__.7} parent=0 // loop_pre_header
    _
  $region3: #{a_call__.7} parent=0 // loop_header
    %s13 = sphi 0, %s17
    %p14 = scmp.ge.s32.totalorder %s13, 4
    %s23 = sphi 0, %s25
    %s26 = sphi 0, %s23
    %s27 = sphi 0, %s26
    %s43 = sphi 0, %s27
    %s47 = sphi 0, %s47
    %s49 = sphi 0, %s47
    %s50 = sphi 0, %s49
    %s64 = sphi 0, %s50
    %s68 = sphi 0, %s68
    %s70 = sphi 0, %s68
    %s71 = sphi 0, %s70
    %s85 = sphi 0, %s71
    %s89 = sphi 0, %s89
    %s91 = sphi 0, %s89
    %s92 = sphi 0, %s91
    %s106 = sphi 0, %s92
    %s110 = sphi 0, %s110
    %s112 = sphi 0, %s110
    %s113 = sphi 0, %s112
    %s127 = sphi 0, %s113
    %s131 = sphi 0, %s131
    %s133 = sphi 0, %s131
    %s134 = sphi 0, %s133
    %s148 = sphi 0, %s134
    %s152 = sphi 0, %s152
    %s154 = sphi 0, %s152
    %s155 = sphi 0, %s154
    %s169 = sphi 0, %s155
    %s175 = sphi 0, %s177
    %s178 = sphi 0, %s175
    %s179 = sphi 0, %s178
    %s195 = sphi 0, %s179
  $region4: #{a_call__.7} parent=0 // loop_header_branch
    %16 = sbr.rel (%p14) target = $region8
  $region5: #{a_call__.7} parent=0 // loop_body
    %s18 = ssub.s32 %s13, 1
    %s19 = ssub.s32 %s13, 2
    %s20 = sadd.s32 %s13, 1
    %s21 = ssub.s32 %s13, %s20
    %p22 = scmp.eq.s32.totalorder %s21, 0
    %s24 = sadd.s32 %s23, 1
    %s25 = scalar_select %p22, %s23, %s24
    %p28 = pneg %p22
    %p29 = scmp.eq.s32.totalorder %s13, 1
    %p30 = por %p28, %p29
    %p31 = scmp.ne.s32.totalorder %s23, %s26
    %p32 = scmp.eq.s32.totalorder %s13, 0
    %p33 = por %p31, %p32
    %p34 = scmp.ne.s32.totalorder %s23, %s26
    %p35 = scmp.eq.s32.totalorder %s18, 1
    %p36 = por %p34, %p35
    %p37 = scmp.ne.s32.totalorder %s26, %s27
    %p38 = scmp.eq.s32.totalorder %s18, 0
    %p39 = por %p37, %p38
    %p40 = scmp.ne.s32.totalorder %s26, %s27
    %p41 = scmp.eq.s32.totalorder %s19, 1
    %p42 = por %p40, %p41
    %p44 = scmp.ne.s32.totalorder %s27, %s43
    %p45 = scmp.eq.s32.totalorder %s19, 0
    %p46 = por %p44, %p45
    %s48 = sadd.s32 %s47, 1
    %p51 = scmp.eq.s32.totalorder %s13, 1
    %p52 = scmp.ne.s32.totalorder %s47, %s49
    %p53 = scmp.eq.s32.totalorder %s13, 0
    %p54 = por %p52, %p53
    %p55 = scmp.ne.s32.totalorder %s47, %s49
    %p56 = scmp.eq.s32.totalorder %s18, 1
    %p57 = por %p55, %p56
    %p58 = scmp.ne.s32.totalorder %s49, %s50
    %p59 = scmp.eq.s32.totalorder %s18, 0
    %p60 = por %p58, %p59
    %p61 = scmp.ne.s32.totalorder %s49, %s50
    %p62 = scmp.eq.s32.totalorder %s19, 1
    %p63 = por %p61, %p62
    %p65 = scmp.ne.s32.totalorder %s50, %s64
    %p66 = scmp.eq.s32.totalorder %s19, 0
    %p67 = por %p65, %p66
    %s69 = sadd.s32 %s68, 1
    %p72 = scmp.eq.s32.totalorder %s13, 1
    %p73 = scmp.ne.s32.totalorder %s68, %s70
    %p74 = scmp.eq.s32.totalorder %s13, 0
    %p75 = por %p73, %p74
    %p76 = scmp.ne.s32.totalorder %s68, %s70
    %p77 = scmp.eq.s32.totalorder %s18, 1
    %p78 = por %p76, %p77
    %p79 = scmp.ne.s32.totalorder %s70, %s71
    %p80 = scmp.eq.s32.totalorder %s18, 0
    %p81 = por %p79, %p80
    %p82 = scmp.ne.s32.totalorder %s70, %s71
    %p83 = scmp.eq.s32.totalorder %s19, 1
    %p84 = por %p82, %p83
    %p86 = scmp.ne.s32.totalorder %s71, %s85
    %p87 = scmp.eq.s32.totalorder %s19, 0
    %p88 = por %p86, %p87
    %s90 = sadd.s32 %s89, 1
    %p93 = scmp.eq.s32.totalorder %s13, 1
    %p94 = scmp.ne.s32.totalorder %s89, %s91
    %p95 = scmp.eq.s32.totalorder %s13, 0
    %p96 = por %p94, %p95
    %p97 = scmp.ne.s32.totalorder %s89, %s91
    %p98 = scmp.eq.s32.totalorder %s18, 1
    %p99 = por %p97, %p98
    %p100 = scmp.ne.s32.totalorder %s91, %s92
    %p101 = scmp.eq.s32.totalorder %s18, 0
    %p102 = por %p100, %p101
    %p103 = scmp.ne.s32.totalorder %s91, %s92
    %p104 = scmp.eq.s32.totalorder %s19, 1
    %p105 = por %p103, %p104
    %p107 = scmp.ne.s32.totalorder %s92, %s106
    %p108 = scmp.eq.s32.totalorder %s19, 0
    %p109 = por %p107, %p108
    %s111 = sadd.s32 %s110, 1
    %p114 = scmp.eq.s32.totalorder %s13, 1
    %p115 = scmp.ne.s32.totalorder %s110, %s112
    %p116 = scmp.eq.s32.totalorder %s13, 0
    %p117 = por %p115, %p116
    %p118 = scmp.ne.s32.totalorder %s110, %s112
    %p119 = scmp.eq.s32.totalorder %s18, 1
    %p120 = por %p118, %p119
    %p121 = scmp.ne.s32.totalorder %s112, %s113
    %p122 = scmp.eq.s32.totalorder %s18, 0
    %p123 = por %p121, %p122
    %p124 = scmp.ne.s32.totalorder %s112, %s113
    %p125 = scmp.eq.s32.totalorder %s19, 1
    %p126 = por %p124, %p125
    %p128 = scmp.ne.s32.totalorder %s113, %s127
    %p129 = scmp.eq.s32.totalorder %s19, 0
    %p130 = por %p128, %p129
    %s132 = sadd.s32 %s131, 1
    %p135 = scmp.eq.s32.totalorder %s13, 1
    %p136 = scmp.ne.s32.totalorder %s131, %s133
    %p137 = scmp.eq.s32.totalorder %s13, 0
    %p138 = por %p136, %p137
    %p139 = scmp.ne.s32.totalorder %s131, %s133
    %p140 = scmp.eq.s32.totalorder %s18, 1
    %p141 = por %p139, %p140
    %p142 = scmp.ne.s32.totalorder %s133, %s134
    %p143 = scmp.eq.s32.totalorder %s18, 0
    %p144 = por %p142, %p143
    %p145 = scmp.ne.s32.totalorder %s133, %s134
    %p146 = scmp.eq.s32.totalorder %s19, 1
    %p147 = por %p145, %p146
    %p149 = scmp.ne.s32.totalorder %s134, %s148
    %p150 = scmp.eq.s32.totalorder %s19, 0
    %p151 = por %p149, %p150
    %s153 = sadd.s32 %s152, 1
    %p156 = scmp.eq.s32.totalorder %s13, 1
    %p157 = scmp.ne.s32.totalorder %s152, %s154
    %p158 = scmp.eq.s32.totalorder %s13, 0
    %p159 = por %p157, %p158
    %p160 = scmp.ne.s32.totalorder %s152, %s154
    %p161 = scmp.eq.s32.totalorder %s18, 1
    %p162 = por %p160, %p161
    %p163 = scmp.ne.s32.totalorder %s154, %s155
    %p164 = scmp.eq.s32.totalorder %s18, 0
    %p165 = por %p163, %p164
    %p166 = scmp.ne.s32.totalorder %s154, %s155
    %p167 = scmp.eq.s32.totalorder %s19, 1
    %p168 = por %p166, %p167
    %p170 = scmp.ne.s32.totalorder %s155, %s169
    %p171 = scmp.eq.s32.totalorder %s19, 0
    %p172 = por %p170, %p171
    %s173 = ssub.s32 %s13, %s20
    %p174 = scmp.eq.s32.totalorder %s173, 0
    %s176 = sadd.s32 %s175, 1
    %s177 = scalar_select %p174, %s175, %s176
    %p180 = pneg %p174
    %p181 = scmp.eq.s32.totalorder %s13, 1
    %p182 = por %p180, %p181
    %p183 = scmp.ne.s32.totalorder %s175, %s178
    %p184 = scmp.eq.s32.totalorder %s13, 0
    %p185 = por %p183, %p184
    %p186 = scmp.ne.s32.totalorder %s175, %s178
    %p187 = scmp.eq.s32.totalorder %s18, 1
    %p188 = por %p186, %p187
    %p189 = scmp.ne.s32.totalorder %s178, %s179
    %p190 = scmp.eq.s32.totalorder %s18, 0
    %p191 = por %p189, %p190
    %p192 = scmp.ne.s32.totalorder %s178, %s179
    %p193 = scmp.eq.s32.totalorder %s19, 1
    %p194 = por %p192, %p193
    %p196 = scmp.ne.s32.totalorder %s179, %s195
    %p197 = scmp.eq.s32.totalorder %s19, 0
    %p198 = por %p196, %p197
    %p199 = scmp.le.s32.totalorder 1, %s13
    %p200 = scmp.lt.s32.totalorder %s13, 3
    %p201 = pnand %p199, %p200
    %p202 = pneg %p201
    // Predicated region
    $region9: #{a_call__.7} parent=5 // pred_check
      _
    $region10: #{a_call__.7} parent=5 // pred_check_branch
      %204 = sbr.rel (%p201) target = $region12
    $region11: #{a_call__.7} parent=5 // pred_region
      %s205 = ssub.s32 %s13, 1
      // Predicated region
      $region13: #{a_call__.7} parent=11 // pred_check
        %p206 = pneg %p60
      $region14: #{a_call__.7} parent=11 // pred_check_branch
        %208 = sbr.rel (%p206) target = $region16
      $region15: #{a_call__.7} parent=11 // pred_region
        _
      $region16: #{a_call__.7} parent=11 // pred_fallthru
        _
      // Predicated region
      $region17: #{a_call__.7} parent=11 // pred_check
        %p209 = pneg %p81
      $region18: #{a_call__.7} parent=11 // pred_check_branch
        %211 = sbr.rel (%p209) target = $region20
      $region19: #{a_call__.7} parent=11 // pred_region
        _
      $region20: #{a_call__.7} parent=11 // pred_fallthru
        _
      // Predicated region
      $region21: #{a_call__.7} parent=11 // pred_check
        %p212 = pneg %p102
      $region22: #{a_call__.7} parent=11 // pred_check_branch
        %214 = sbr.rel (%p212) target = $region24
      $region23: #{a_call__.7} parent=11 // pred_region
        _
      $region24: #{a_call__.7} parent=11 // pred_fallthru
        _
      // Predicated region
      $region25: #{a_call__.7} parent=11 // pred_check
        %p215 = pneg %p123
      $region26: #{a_call__.7} parent=11 // pred_check_branch
        %217 = sbr.rel (%p215) target = $region28
      $region27: #{a_call__.7} parent=11 // pred_region
        _
      $region28: #{a_call__.7} parent=11 // pred_fallthru
        _
      // Predicated region
      $region29: #{a_call__.7} parent=11 // pred_check
        %p218 = pneg %p144
      $region30: #{a_call__.7} parent=11 // pred_check_branch
        %220 = sbr.rel (%p218) target = $region32
      $region31: #{a_call__.7} parent=11 // pred_region
        _
      $region32: #{a_call__.7} parent=11 // pred_fallthru
        _
      // Predicated region
      $region33: #{a_call__.7} parent=11 // pred_check
        %p221 = pneg %p165
      $region34: #{a_call__.7} parent=11 // pred_check_branch
        %223 = sbr.rel (%p221) target = $region36
      $region35: #{a_call__.7} parent=11 // pred_region
        _
      $region36: #{a_call__.7} parent=11 // pred_fallthru
        _
    $region12: #{a_call__.7} parent=5 // pred_fallthru
      _
    %p224 = scmp.lt.s32.totalorder %s13, 2
    // Predicated region
    $region37: #{a_call__.7} parent=5 // pred_check
      %p225 = pneg %p224
    $region38: #{a_call__.7} parent=5 // pred_check_branch
      %227 = sbr.rel (%p225) target = $region40
    $region39: #{a_call__.7} parent=5 // pred_region
      // Predicated region
      $region41: #{a_call__.7} parent=39 // pred_check
        %p228 = pneg %p33
      $region42: #{a_call__.7} parent=39 // pred_check_branch
        %230 = sbr.rel (%p228) target = $region44
      $region43: #{a_call__.7} parent=39 // pred_region
        %s231 = smul.u32 4, %s13
        %p232 = scmp.lt.s32.totalorder %s231, 7
        %s233 = scalar_select %p232, %s231, 7
        %s234 = smul.addr %s233, 2
        %s235 = smul.addr %s234, 4
        %s236 = scalar_lea.vmem %s0, %s235
        %s237 = smul.u32 4, %s13
      $region44: #{a_call__.7} parent=39 // pred_fallthru
        _
    $region40: #{a_call__.7} parent=5 // pred_fallthru
      _
    %p238 = scmp.le.s32.totalorder 1, %s13
    %p239 = scmp.lt.s32.totalorder %s13, 3
    %p240 = pnand %p238, %p239
    %p241 = pneg %p240
    // Predicated region
    $region45: #{a_call__.7} parent=5 // pred_check
      _
    $region46: #{a_call__.7} parent=5 // pred_check_branch
      %243 = sbr.rel (%p240) target = $region48
    $region47: #{a_call__.7} parent=5 // pred_region
      %s244 = ssub.s32 %s13, 1
      %s245 = smul.u32 4, %s18
      %p246 = scmp.lt.s32.totalorder %s245, 7
      %s247 = scalar_select %p246, %s245, 7
      %s248 = smul.addr %s247, 2
      %s249 = smul.addr %s248, 4
      %s250 = scalar_lea.vmem %s0, %s249
      %p251 = pneg %p39
      %p252 = pneg %p36
      %p253 = pneg %p60
      %p254 = pneg %p57
      %p255 = pneg %p81
      %p256 = pneg %p78
      %p257 = pneg %p102
      %p258 = pneg %p99
      %p259 = pneg %p123
      %p260 = pneg %p120
      %p261 = pneg %p144
      %p262 = pneg %p141
      %p263 = pneg %p165
      %p264 = pneg %p162
      %p265 = pneg %p191
      %p266 = pneg %p188
      %s267 = smul.u32 4, %s18
      %p268 = scmp.lt.s32.totalorder %s267, 7
      %s269 = scalar_select %p268, %s267, 7
      %s270 = smul.addr %s269, 4
      %s271 = scalar_lea.vmem %s7, %s270
      %s272 = smul.u32 4, %s18
      %p273 = scmp.lt.s32.totalorder %s272, 7
      %s274 = scalar_select %p273, %s272, 7
      %s275 = smul.addr %s274, 2
      %s276 = smul.addr %s275, 4
      %s277 = scalar_lea.vmem %s0, %s276
      %s278 = smul.u32 4, %s18
      %s279 = smul.u32 4, %s18
      %p280 = scmp.lt.s32.totalorder %s279, 7
      %s281 = scalar_select %p280, %s279, 7
      %s282 = smul.addr %s281, 4
      %s283 = scalar_lea.vmem %s7, %s282
      %s284 = smul.u32 4, %s18
      %v286 = vld [vmem:[%s277] sm:$0xf]
      %v287 = vld [vmem:[%s277 + $0x8] sm:$0xf]
      %v288 = vld [vmem:[%s277 + $0x10] sm:$0xf]
      %v289 = vld [vmem:[%s277 + $0x18] sm:$0xf]
      %v290 = vld [vmem:[%s1] sm:$0xf]
      %v291 = vld [vmem:[%s1 + $0x4] sm:$0xf]
      %v292 = vld [vmem:[%s1 + $0x8] sm:$0xf]
      %v293 = vld [vmem:[%s1 + $0xc] sm:$0xf]
      %v294 = vld [vmem:[%s1 + $0x10] sm:$0xf]
      %v295 = vld [vmem:[%s1 + $0x14] sm:$0xf]
      %v296 = vld [vmem:[%s1 + $0x18] sm:$0xf]
      %v297 = vld [vmem:[%s1 + $0x1c] sm:$0xf]
      %v298 = vld [vmem:[%s1 + $0x20] sm:$0xf]
      %v299 = vld [vmem:[%s1 + $0x24] sm:$0xf]
      %v300 = vld [vmem:[%s1 + $0x28] sm:$0xf]
      %v301 = vld [vmem:[%s1 + $0x2c] sm:$0xf]
      %v302 = vld [vmem:[%s1 + $0x30] sm:$0xf]
      %v303 = vld [vmem:[%s1 + $0x34] sm:$0xf]
      %v304 = vld [vmem:[%s1 + $0x38] sm:$0xf]
      %v305 = vld [vmem:[%s1 + $0x3c] sm:$0xf]
      %v306 = vld [vmem:[%s277 + $0x4] sm:$0x1]
      %v307 = vld [vmem:[%s277 + $0xc] sm:$0x1]
      %v308 = vld [vmem:[%s277 + $0x14] sm:$0x1]
      %v309 = vld [vmem:[%s277 + $0x1c] sm:$0x1]
      %vm310 = vsmask.f32 3328
      %vm311 = vsmask.f32 7440
      %vm312 = vmor %vm310, %vm311
      %v314 = vshrl.u32 %v286, 16
      %v316 = vrot.slane %v314, 4
      %v317 = vshll.u32 %v286, 16
      %v319 = vrot.slane %v317, 5
      %v320 = vor.u32 %v316, %v319
      %v321 = vrot.slane %v320, 4
      %v323 = vshll.u32 %v306, 16
      %v325 = vrot.slane %v323, 5
      %v326 = vsel %vm312, %v321, %v325
      %v328 = vshrl.u32 %v287, 16
      %v330 = vrot.slane %v328, 4
      %v331 = vshll.u32 %v287, 16
      %v333 = vrot.slane %v331, 5
      %v334 = vor.u32 %v330, %v333
      %v335 = vrot.slane %v334, 4
      %v337 = vshll.u32 %v307, 16
      %v339 = vrot.slane %v337, 5
      %v340 = vsel %vm312, %v335, %v339
      %v342 = vshrl.u32 %v288, 16
      %v344 = vrot.slane %v342, 4
      %v345 = vshll.u32 %v288, 16
      %v347 = vrot.slane %v345, 5
      %v348 = vor.u32 %v344, %v347
      %v349 = vrot.slane %v348, 4
      %v351 = vshll.u32 %v308, 16
      %v353 = vrot.slane %v351, 5
      %v354 = vsel %vm312, %v349, %v353
      %v356 = vshrl.u32 %v289, 16
      %v358 = vrot.slane %v356, 4
      %v359 = vshll.u32 %v289, 16
      %v361 = vrot.slane %v359, 5
      %v362 = vor.u32 %v358, %v361
      %v363 = vrot.slane %v362, 4
      %v365 = vshll.u32 %v309, 16
      %v367 = vrot.slane %v365, 5
      %v368 = vsel %vm312, %v363, %v367
      %v369 = vld [vmem:[%s2] sm:$0xf]
      %v370 = vld [vmem:[%s2 + $0x4] sm:$0xf]
      %v371 = vld [vmem:[%s2 + $0x8] sm:$0xf]
      %v372 = vld [vmem:[%s2 + $0xc] sm:$0xf]
      %v373 = vld [vmem:[%s2 + $0x10] sm:$0xf]
      %v374 = vld [vmem:[%s2 + $0x14] sm:$0xf]
      %v375 = vld [vmem:[%s2 + $0x18] sm:$0xf]
      %v376 = vld [vmem:[%s2 + $0x1c] sm:$0xf]
      %v377 = vld [vmem:[%s2 + $0x20] sm:$0xf]
      %v378 = vld [vmem:[%s2 + $0x24] sm:$0xf]
      %v379 = vld [vmem:[%s2 + $0x28] sm:$0xf]
      %v380 = vld [vmem:[%s2 + $0x2c] sm:$0xf]
      %v381 = vld [vmem:[%s2 + $0x30] sm:$0xf]
      %v382 = vld [vmem:[%s2 + $0x34] sm:$0xf]
      %v383 = vld [vmem:[%s2 + $0x38] sm:$0xf]
      %v384 = vld [vmem:[%s2 + $0x3c] sm:$0xf]
      %v385 = vunpack.c.l.b16 %v326
      %v386 = vunpack.c.l.b16 %v340
      %v387 = vunpack.c.l.b16 %v354
      %v388 = vunpack.c.l.b16 %v368
      %v389 = vpack.c.b16 %v386, %v385
      %v390 = vpack.c.b16 %v388, %v387
      %v409 = vunpack.c.l.b16 %v369
      %v410 = vunpack.c.l.b16 %v370
      %v411 = vunpack.c.l.b16 %v371
      %v412 = vunpack.c.l.b16 %v372
      %v413 = vunpack.c.l.b16 %v373
      %v414 = vunpack.c.l.b16 %v374
      %v415 = vunpack.c.l.b16 %v375
      %v416 = vunpack.c.l.b16 %v376
      %v417 = vunpack.c.l.b16 %v377
      %v418 = vunpack.c.l.b16 %v378
      %v419 = vunpack.c.l.b16 %v379
      %v420 = vunpack.c.l.b16 %v380
      %v421 = vunpack.c.l.b16 %v381
      %v422 = vunpack.c.l.b16 %v382
      %v423 = vunpack.c.l.b16 %v383
      %v424 = vunpack.c.l.b16 %v384
      %v425 = vpack.c.b16 %v410, %v409
      %v426 = vpack.c.b16 %v412, %v411
      %v427 = vpack.c.b16 %v414, %v413
      %v428 = vpack.c.b16 %v416, %v415
      %v429 = vpack.c.b16 %v418, %v417
      %v430 = vpack.c.b16 %v420, %v419
      %v431 = vpack.c.b16 %v422, %v421
      %v432 = vpack.c.b16 %v424, %v423
      %441 = vmatprep.subr.bf16.mxu0 0
      %442 = vmatpush1.bf16.msra.mxu0 %v432
      %443 = vmatprep.subr.bf16.mxu0 0
      %444 = vmatpush1.bf16.msra.mxu0 %v431
      %445 = vmatprep.subr.bf16.mxu0 0
      %446 = vmatpush1.bf16.msra.mxu0 %v430
      %447 = vmatprep.subr.bf16.mxu0 0
      %448 = vmatpush1.bf16.msra.mxu0 %v429
      %449 = vmatprep.subr.bf16.mxu0 0
      %450 = vmatpush1.bf16.msra.mxu0 %v428
      %451 = vmatprep.subr.bf16.mxu0 0
      %452 = vmatpush1.bf16.msra.mxu0 %v427
      %453 = vmatprep.subr.bf16.mxu0 0
      %454 = vmatpush1.bf16.msra.mxu0 %v426
      %455 = vmatprep.subr.bf16.mxu0 0
      %456 = vmatpush1.bf16.msra.mxu0 %v425
      %457 = vmatprep.subr.bf16.mxu0 0
      %458 = vmatpush2.bf16.msra.mxu0 0
      %459 = vmatprep.subr.bf16.mxu0 0
      %460 = vmatpush2.bf16.msra.mxu0 0
      %461 = vmatprep.subr.bf16.mxu0 0
      %462 = vmatpush2.bf16.msra.mxu0 0
      %463 = vmatprep.subr.bf16.mxu0 0
      %464 = vmatpush2.bf16.msra.mxu0 0
      %465 = vmatprep.subr.bf16.mxu0 0
      %466 = vmatpush2.bf16.msra.mxu0 0
      %467 = vmatprep.subr.bf16.mxu0 0
      %468 = vmatpush2.bf16.msra.mxu0 0
      %469 = vmatprep.subr.bf16.mxu0 0
      %470 = vmatpush2.bf16.msra.mxu0 0
      %471 = vmatprep.subr.bf16.mxu0 0
      %472 = vmatpush2.bf16.msra.mxu0 0
      %473 = vmatprep.mubr.bf16.mxu0 0
      %474 = vmatmul.mubr.bf16.gmra.mxu0 %v389
      %v475 = vpop.f32.mrf.mxu0
      %v476 = vadd.f32 0.0, %v475
      %v477 = vpop.f32.mrf.mxu0
      %v478 = vpop.f32.mrf.mxu0
      %v479 = vadd.f32 0.0, %v478
      %v480 = vpop.f32.mrf.mxu0
      %481 = vmatprep.mubr.bf16.mxu0 0
      %482 = vmatmul.mubr.bf16.gmra.mxu0 %v390
      %v483 = vpop.f32.mrf.mxu0
      %v484 = vadd.f32 0.0, %v483
      %v485 = vpop.f32.mrf.mxu0
      %v486 = vpop.f32.mrf.mxu0
      %v487 = vadd.f32 0.0, %v486
      %v488 = vpop.f32.mrf.mxu0
      %489 = vdwg.mxu0
      %v494 = vunpack.c.l.b16 %v286
      %v495 = vunpack.c.l.b16 %v287
      %v496 = vunpack.c.l.b16 %v288
      %v497 = vunpack.c.l.b16 %v289
      %v498 = vpack.c.b16 %v495, %v494
      %v499 = vpack.c.b16 %v497, %v496
      %v518 = vunpack.c.l.b16 %v290
      %v519 = vunpack.c.l.b16 %v291
      %v520 = vunpack.c.l.b16 %v292
      %v521 = vunpack.c.l.b16 %v293
      %v522 = vunpack.c.l.b16 %v294
      %v523 = vunpack.c.l.b16 %v295
      %v524 = vunpack.c.l.b16 %v296
      %v525 = vunpack.c.l.b16 %v297
      %v526 = vunpack.c.l.b16 %v298
      %v527 = vunpack.c.l.b16 %v299
      %v528 = vunpack.c.l.b16 %v300
      %v529 = vunpack.c.l.b16 %v301
      %v530 = vunpack.c.l.b16 %v302
      %v531 = vunpack.c.l.b16 %v303
      %v532 = vunpack.c.l.b16 %v304
      %v533 = vunpack.c.l.b16 %v305
      %v534 = vpack.c.b16 %v519, %v518
      %v535 = vpack.c.b16 %v521, %v520
      %v536 = vpack.c.b16 %v523, %v522
      %v537 = vpack.c.b16 %v525, %v524
      %v538 = vpack.c.b16 %v527, %v526
      %v539 = vpack.c.b16 %v529, %v528
      %v540 = vpack.c.b16 %v531, %v530
      %v541 = vpack.c.b16 %v533, %v532
      %550 = vmatprep.subr.bf16.mxu0 0
      %551 = vmatpush1.bf16.msra.mxu0 %v541
      %552 = vmatprep.subr.bf16.mxu0 0
      %553 = vmatpush1.bf16.msra.mxu0 %v540
      %554 = vmatprep.subr.bf16.mxu0 0
      %555 = vmatpush1.bf16.msra.mxu0 %v539
      %556 = vmatprep.subr.bf16.mxu0 0
      %557 = vmatpush1.bf16.msra.mxu0 %v538
      %558 = vmatprep.subr.bf16.mxu0 0
      %559 = vmatpush1.bf16.msra.mxu0 %v537
      %560 = vmatprep.subr.bf16.mxu0 0
      %561 = vmatpush1.bf16.msra.mxu0 %v536
      %562 = vmatprep.subr.bf16.mxu0 0
      %563 = vmatpush1.bf16.msra.mxu0 %v535
      %564 = vmatprep.subr.bf16.mxu0 0
      %565 = vmatpush1.bf16.msra.mxu0 %v534
      %566 = vmatprep.subr.bf16.mxu0 0
      %567 = vmatpush2.bf16.msra.mxu0 0
      %568 = vmatprep.subr.bf16.mxu0 0
      %569 = vmatpush2.bf16.msra.mxu0 0
      %570 = vmatprep.subr.bf16.mxu0 0
      %571 = vmatpush2.bf16.msra.mxu0 0
      %572 = vmatprep.subr.bf16.mxu0 0
      %573 = vmatpush2.bf16.msra.mxu0 0
      %574 = vmatprep.subr.bf16.mxu0 0
      %575 = vmatpush2.bf16.msra.mxu0 0
      %576 = vmatprep.subr.bf16.mxu0 0
      %577 = vmatpush2.bf16.msra.mxu0 0
      %578 = vmatprep.subr.bf16.mxu0 0
      %579 = vmatpush2.bf16.msra.mxu0 0
      %580 = vmatprep.subr.bf16.mxu0 0
      %581 = vmatpush2.bf16.msra.mxu0 0
      %582 = vmatprep.mubr.bf16.mxu0 0
      %583 = vmatmul.mubr.bf16.gmra.mxu0 %v498
      %v584 = vpop.f32.mrf.mxu0
      %v585 = vadd.f32 %v476, %v584
      %v586 = vpop.f32.mrf.mxu0
      %v587 = vpop.f32.mrf.mxu0
      %v588 = vadd.f32 %v479, %v587
      %v589 = vpop.f32.mrf.mxu0
      %590 = vmatprep.mubr.bf16.mxu0 0
      %591 = vmatmul.mubr.bf16.gmra.mxu0 %v499
      %v592 = vpop.f32.mrf.mxu0
      %v593 = vadd.f32 %v484, %v592
      %v594 = vpop.f32.mrf.mxu0
      %v595 = vpop.f32.mrf.mxu0
      %v596 = vadd.f32 %v487, %v595
      %v597 = vpop.f32.mrf.mxu0
      %598 = vdwg.mxu0
      %v599 = vld [vmem:[%s277] sm:$0xe]
      %v600 = vld [vmem:[%s277 + $0x8] sm:$0xe]
      %v601 = vld [vmem:[%s277 + $0x10] sm:$0xe]
      %v602 = vld [vmem:[%s277 + $0x18] sm:$0xe]
      %vm611 = vcmask 1042432
      %vm612 = vcmask 1046532
      %vm613 = vmor %vm611, %vm612
      %v614 = vrot.slane %v599, 5
      %v615 = vrot.slane %v614, 4
      %v616 = vrot.slane %v306, 5
      %v617 = vsel %vm613, %v615, %v616
      %v618 = vrot.slane %v600, 5
      %v619 = vrot.slane %v618, 4
      %v620 = vrot.slane %v307, 5
      %v621 = vsel %vm613, %v619, %v620
      %v622 = vrot.slane %v601, 5
      %v623 = vrot.slane %v622, 4
      %v624 = vrot.slane %v308, 5
      %v625 = vsel %vm613, %v623, %v624
      %v626 = vrot.slane %v602, 5
      %v627 = vrot.slane %v626, 4
      %v628 = vrot.slane %v309, 5
      %v629 = vsel %vm613, %v627, %v628
      %v630 = vld [vmem:[%s3] sm:$0xf]
      %v631 = vld [vmem:[%s3 + $0x4] sm:$0xf]
      %v632 = vld [vmem:[%s3 + $0x8] sm:$0xf]
      %v633 = vld [vmem:[%s3 + $0xc] sm:$0xf]
      %v634 = vld [vmem:[%s3 + $0x10] sm:$0xf]
      %v635 = vld [vmem:[%s3 + $0x14] sm:$0xf]
      %v636 = vld [vmem:[%s3 + $0x18] sm:$0xf]
      %v637 = vld [vmem:[%s3 + $0x1c] sm:$0xf]
      %v638 = vld [vmem:[%s3 + $0x20] sm:$0xf]
      %v639 = vld [vmem:[%s3 + $0x24] sm:$0xf]
      %v640 = vld [vmem:[%s3 + $0x28] sm:$0xf]
      %v641 = vld [vmem:[%s3 + $0x2c] sm:$0xf]
      %v642 = vld [vmem:[%s3 + $0x30] sm:$0xf]
      %v643 = vld [vmem:[%s3 + $0x34] sm:$0xf]
      %v644 = vld [vmem:[%s3 + $0x38] sm:$0xf]
      %v645 = vld [vmem:[%s3 + $0x3c] sm:$0xf]
      %v646 = vunpack.c.l.b16 %v617
      %v647 = vunpack.c.l.b16 %v621
      %v648 = vunpack.c.l.b16 %v625
      %v649 = vunpack.c.l.b16 %v629
      %v650 = vpack.c.b16 %v647, %v646
      %v651 = vpack.c.b16 %v649, %v648
      %v670 = vunpack.c.l.b16 %v630
      %v671 = vunpack.c.l.b16 %v631
      %v672 = vunpack.c.l.b16 %v632
      %v673 = vunpack.c.l.b16 %v633
      %v674 = vunpack.c.l.b16 %v634
      %v675 = vunpack.c.l.b16 %v635
      %v676 = vunpack.c.l.b16 %v636
      %v677 = vunpack.c.l.b16 %v637
      %v678 = vunpack.c.l.b16 %v638
      %v679 = vunpack.c.l.b16 %v639
      %v680 = vunpack.c.l.b16 %v640
      %v681 = vunpack.c.l.b16 %v641
      %v682 = vunpack.c.l.b16 %v642
      %v683 = vunpack.c.l.b16 %v643
      %v684 = vunpack.c.l.b16 %v644
      %v685 = vunpack.c.l.b16 %v645
      %v686 = vpack.c.b16 %v671, %v670
      %v687 = vpack.c.b16 %v673, %v672
      %v688 = vpack.c.b16 %v675, %v674
      %v689 = vpack.c.b16 %v677, %v676
      %v690 = vpack.c.b16 %v679, %v678
      %v691 = vpack.c.b16 %v681, %v680
      %v692 = vpack.c.b16 %v683, %v682
      %v693 = vpack.c.b16 %v685, %v684
      %702 = vmatprep.subr.bf16.mxu0 0
      %703 = vmatpush1.bf16.msra.mxu0 %v693
      %704 = vmatprep.subr.bf16.mxu0 0
      %705 = vmatpush1.bf16.msra.mxu0 %v692
      %706 = vmatprep.subr.bf16.mxu0 0
      %707 = vmatpush1.bf16.msra.mxu0 %v691
      %708 = vmatprep.subr.bf16.mxu0 0
      %709 = vmatpush1.bf16.msra.mxu0 %v690
      %710 = vmatprep.subr.bf16.mxu0 0
      %711 = vmatpush1.bf16.msra.mxu0 %v689
      %712 = vmatprep.subr.bf16.mxu0 0
      %713 = vmatpush1.bf16.msra.mxu0 %v688
      %714 = vmatprep.subr.bf16.mxu0 0
      %715 = vmatpush1.bf16.msra.mxu0 %v687
      %716 = vmatprep.subr.bf16.mxu0 0
      %717 = vmatpush1.bf16.msra.mxu0 %v686
      %718 = vmatprep.subr.bf16.mxu0 0
      %719 = vmatpush2.bf16.msra.mxu0 0
      %720 = vmatprep.subr.bf16.mxu0 0
      %721 = vmatpush2.bf16.msra.mxu0 0
      %722 = vmatprep.subr.bf16.mxu0 0
      %723 = vmatpush2.bf16.msra.mxu0 0
      %724 = vmatprep.subr.bf16.mxu0 0
      %725 = vmatpush2.bf16.msra.mxu0 0
      %726 = vmatprep.subr.bf16.mxu0 0
      %727 = vmatpush2.bf16.msra.mxu0 0
      %728 = vmatprep.subr.bf16.mxu0 0
      %729 = vmatpush2.bf16.msra.mxu0 0
      %730 = vmatprep.subr.bf16.mxu0 0
      %731 = vmatpush2.bf16.msra.mxu0 0
      %732 = vmatprep.subr.bf16.mxu0 0
      %733 = vmatpush2.bf16.msra.mxu0 0
      %734 = vmatprep.mubr.bf16.mxu0 0
      %735 = vmatmul.mubr.bf16.gmra.mxu0 %v650
      %v736 = vpop.f32.mrf.mxu0
      %v737 = vadd.f32 0.0, %v736
      %v738 = vpop.f32.mrf.mxu0
      %v739 = vpop.f32.mrf.mxu0
      %v740 = vadd.f32 0.0, %v739
      %v741 = vpop.f32.mrf.mxu0
      %742 = vmatprep.mubr.bf16.mxu0 0
      %743 = vmatmul.mubr.bf16.gmra.mxu0 %v651
      %v744 = vpop.f32.mrf.mxu0
      %v745 = vadd.f32 0.0, %v744
      %v746 = vpop.f32.mrf.mxu0
      %v747 = vpop.f32.mrf.mxu0
      %v748 = vadd.f32 0.0, %v747
      %v749 = vpop.f32.mrf.mxu0
      %750 = vdwg.mxu0
      %v751 = vadd.f32 %v585, %v737
      %v752 = vadd.f32 %v588, %v740
      %v753 = vadd.f32 %v593, %v745
      %v754 = vadd.f32 %v596, %v748
      %v755 = vld [vmem:[%s277 + $0x4] sm:$0x3]
      %v756 = vld [vmem:[%s277 + $0xc] sm:$0x3]
      %v757 = vld [vmem:[%s277 + $0x14] sm:$0x3]
      %v758 = vld [vmem:[%s277 + $0x1c] sm:$0x3]
      %vm759 = vsmask.f32 2304
      %vm760 = vsmask.f32 6416
      %vm761 = vmor %vm759, %vm760
      %v763 = vshrl.u32 %v599, 16
      %v765 = vrot.slane %v763, 5
      %v766 = vshll.u32 %v599, 16
      %v768 = vrot.slane %v766, 6
      %v769 = vor.u32 %v765, %v768
      %v770 = vrot.slane %v769, 4
      %v772 = vshrl.u32 %v755, 16
      %v774 = vrot.slane %v772, 5
      %v775 = vshll.u32 %v755, 16
      %v777 = vrot.slane %v775, 6
      %v778 = vor.u32 %v774, %v777
      %v779 = vsel %vm761, %v770, %v778
      %v781 = vshrl.u32 %v600, 16
      %v783 = vrot.slane %v781, 5
      %v784 = vshll.u32 %v600, 16
      %v786 = vrot.slane %v784, 6
      %v787 = vor.u32 %v783, %v786
      %v788 = vrot.slane %v787, 4
      %v790 = vshrl.u32 %v756, 16
      %v792 = vrot.slane %v790, 5
      %v793 = vshll.u32 %v756, 16
      %v795 = vrot.slane %v793, 6
      %v796 = vor.u32 %v792, %v795
      %v797 = vsel %vm761, %v788, %v796
      %v799 = vshrl.u32 %v601, 16
      %v801 = vrot.slane %v799, 5
      %v802 = vshll.u32 %v601, 16
      %v804 = vrot.slane %v802, 6
      %v805 = vor.u32 %v801, %v804
      %v806 = vrot.slane %v805, 4
      %v808 = vshrl.u32 %v757, 16
      %v810 = vrot.slane %v808, 5
      %v811 = vshll.u32 %v757, 16
      %v813 = vrot.slane %v811, 6
      %v814 = vor.u32 %v810, %v813
      %v815 = vsel %vm761, %v806, %v814
      %v817 = vshrl.u32 %v602, 16
      %v819 = vrot.slane %v817, 5
      %v820 = vshll.u32 %v602, 16
      %v822 = vrot.slane %v820, 6
      %v823 = vor.u32 %v819, %v822
      %v824 = vrot.slane %v823, 4
      %v826 = vshrl.u32 %v758, 16
      %v828 = vrot.slane %v826, 5
      %v829 = vshll.u32 %v758, 16
      %v831 = vrot.slane %v829, 6
      %v832 = vor.u32 %v828, %v831
      %v833 = vsel %vm761, %v824, %v832
      %v834 = vld [vmem:[%s4] sm:$0xf]
      %v835 = vld [vmem:[%s4 + $0x4] sm:$0xf]
      %v836 = vld [vmem:[%s4 + $0x8] sm:$0xf]
      %v837 = vld [vmem:[%s4 + $0xc] sm:$0xf]
      %v838 = vld [vmem:[%s4 + $0x10] sm:$0xf]
      %v839 = vld [vmem:[%s4 + $0x14] sm:$0xf]
      %v840 = vld [vmem:[%s4 + $0x18] sm:$0xf]
      %v841 = vld [vmem:[%s4 + $0x1c] sm:$0xf]
      %v842 = vld [vmem:[%s4 + $0x20] sm:$0xf]
      %v843 = vld [vmem:[%s4 + $0x24] sm:$0xf]
      %v844 = vld [vmem:[%s4 + $0x28] sm:$0xf]
      %v845 = vld [vmem:[%s4 + $0x2c] sm:$0xf]
      %v846 = vld [vmem:[%s4 + $0x30] sm:$0xf]
      %v847 = vld [vmem:[%s4 + $0x34] sm:$0xf]
      %v848 = vld [vmem:[%s4 + $0x38] sm:$0xf]
      %v849 = vld [vmem:[%s4 + $0x3c] sm:$0xf]
      %v850 = vunpack.c.l.b16 %v779
      %v851 = vunpack.c.l.b16 %v797
      %v852 = vunpack.c.l.b16 %v815
      %v853 = vunpack.c.l.b16 %v833
      %v854 = vpack.c.b16 %v851, %v850
      %v855 = vpack.c.b16 %v853, %v852
      %v874 = vunpack.c.l.b16 %v834
      %v875 = vunpack.c.l.b16 %v835
      %v876 = vunpack.c.l.b16 %v836
      %v877 = vunpack.c.l.b16 %v837
      %v878 = vunpack.c.l.b16 %v838
      %v879 = vunpack.c.l.b16 %v839
      %v880 = vunpack.c.l.b16 %v840
      %v881 = vunpack.c.l.b16 %v841
      %v882 = vunpack.c.l.b16 %v842
      %v883 = vunpack.c.l.b16 %v843
      %v884 = vunpack.c.l.b16 %v844
      %v885 = vunpack.c.l.b16 %v845
      %v886 = vunpack.c.l.b16 %v846
      %v887 = vunpack.c.l.b16 %v847
      %v888 = vunpack.c.l.b16 %v848
      %v889 = vunpack.c.l.b16 %v849
      %v890 = vpack.c.b16 %v875, %v874
      %v891 = vpack.c.b16 %v877, %v876
      %v892 = vpack.c.b16 %v879, %v878
      %v893 = vpack.c.b16 %v881, %v880
      %v894 = vpack.c.b16 %v883, %v882
      %v895 = vpack.c.b16 %v885, %v884
      %v896 = vpack.c.b16 %v887, %v886
      %v897 = vpack.c.b16 %v889, %v888
      %906 = vmatprep.subr.bf16.mxu0 0
      %907 = vmatpush1.bf16.msra.mxu0 %v897
      %908 = vmatprep.subr.bf16.mxu0 0
      %909 = vmatpush1.bf16.msra.mxu0 %v896
      %910 = vmatprep.subr.bf16.mxu0 0
      %911 = vmatpush1.bf16.msra.mxu0 %v895
      %912 = vmatprep.subr.bf16.mxu0 0
      %913 = vmatpush1.bf16.msra.mxu0 %v894
      %914 = vmatprep.subr.bf16.mxu0 0
      %915 = vmatpush1.bf16.msra.mxu0 %v893
      %916 = vmatprep.subr.bf16.mxu0 0
      %917 = vmatpush1.bf16.msra.mxu0 %v892
      %918 = vmatprep.subr.bf16.mxu0 0
      %919 = vmatpush1.bf16.msra.mxu0 %v891
      %920 = vmatprep.subr.bf16.mxu0 0
      %921 = vmatpush1.bf16.msra.mxu0 %v890
      %922 = vmatprep.subr.bf16.mxu0 0
      %923 = vmatpush2.bf16.msra.mxu0 0
      %924 = vmatprep.subr.bf16.mxu0 0
      %925 = vmatpush2.bf16.msra.mxu0 0
      %926 = vmatprep.subr.bf16.mxu0 0
      %927 = vmatpush2.bf16.msra.mxu0 0
      %928 = vmatprep.subr.bf16.mxu0 0
      %929 = vmatpush2.bf16.msra.mxu0 0
      %930 = vmatprep.subr.bf16.mxu0 0
      %931 = vmatpush2.bf16.msra.mxu0 0
      %932 = vmatprep.subr.bf16.mxu0 0
      %933 = vmatpush2.bf16.msra.mxu0 0
      %934 = vmatprep.subr.bf16.mxu0 0
      %935 = vmatpush2.bf16.msra.mxu0 0
      %936 = vmatprep.subr.bf16.mxu0 0
      %937 = vmatpush2.bf16.msra.mxu0 0
      %938 = vmatprep.mubr.bf16.mxu0 0
      %939 = vmatmul.mubr.bf16.gmra.mxu0 %v854
      %v940 = vpop.f32.mrf.mxu0
      %v941 = vadd.f32 0.0, %v940
      %v942 = vpop.f32.mrf.mxu0
      %v943 = vpop.f32.mrf.mxu0
      %v944 = vadd.f32 0.0, %v943
      %v945 = vpop.f32.mrf.mxu0
      %946 = vmatprep.mubr.bf16.mxu0 0
      %947 = vmatmul.mubr.bf16.gmra.mxu0 %v855
      %v948 = vpop.f32.mrf.mxu0
      %v949 = vadd.f32 0.0, %v948
      %v950 = vpop.f32.mrf.mxu0
      %v951 = vpop.f32.mrf.mxu0
      %v952 = vadd.f32 0.0, %v951
      %v953 = vpop.f32.mrf.mxu0
      %954 = vdwg.mxu0
      %v955 = vadd.f32 %v751, %v941
      %v956 = vadd.f32 %v752, %v944
      %v957 = vadd.f32 %v753, %v949
      %v958 = vadd.f32 %v754, %v952
      %v959 = vld [vmem:[%s277] sm:$0xc]
      %v960 = vld [vmem:[%s277 + $0x8] sm:$0xc]
      %v961 = vld [vmem:[%s277 + $0x10] sm:$0xc]
      %v962 = vld [vmem:[%s277 + $0x18] sm:$0xc]
      %vm971 = vcmask 1041408
      %vm972 = vcmask 1045508
      %vm973 = vmor %vm971, %vm972
      %v974 = vrot.slane %v959, 6
      %v975 = vrot.slane %v974, 4
      %v976 = vrot.slane %v755, 6
      %v977 = vsel %vm973, %v975, %v976
      %v978 = vrot.slane %v960, 6
      %v979 = vrot.slane %v978, 4
      %v980 = vrot.slane %v756, 6
      %v981 = vsel %vm973, %v979, %v980
      %v982 = vrot.slane %v961, 6
      %v983 = vrot.slane %v982, 4
      %v984 = vrot.slane %v757, 6
      %v985 = vsel %vm973, %v983, %v984
      %v986 = vrot.slane %v962, 6
      %v987 = vrot.slane %v986, 4
      %v988 = vrot.slane %v758, 6
      %v989 = vsel %vm973, %v987, %v988
      %v990 = vld [vmem:[%s5] sm:$0xf]
      %v991 = vld [vmem:[%s5 + $0x4] sm:$0xf]
      %v992 = vld [vmem:[%s5 + $0x8] sm:$0xf]
      %v993 = vld [vmem:[%s5 + $0xc] sm:$0xf]
      %v994 = vld [vmem:[%s5 + $0x10] sm:$0xf]
      %v995 = vld [vmem:[%s5 + $0x14] sm:$0xf]
      %v996 = vld [vmem:[%s5 + $0x18] sm:$0xf]
      %v997 = vld [vmem:[%s5 + $0x1c] sm:$0xf]
      %v998 = vld [vmem:[%s5 + $0x20] sm:$0xf]
      %v999 = vld [vmem:[%s5 + $0x24] sm:$0xf]
      %v1000 = vld [vmem:[%s5 + $0x28] sm:$0xf]
      %v1001 = vld [vmem:[%s5 + $0x2c] sm:$0xf]
      %v1002 = vld [vmem:[%s5 + $0x30] sm:$0xf]
      %v1003 = vld [vmem:[%s5 + $0x34] sm:$0xf]
      %v1004 = vld [vmem:[%s5 + $0x38] sm:$0xf]
      %v1005 = vld [vmem:[%s5 + $0x3c] sm:$0xf]
      %v1006 = vunpack.c.l.b16 %v977
      %v1007 = vunpack.c.l.b16 %v981
      %v1008 = vunpack.c.l.b16 %v985
      %v1009 = vunpack.c.l.b16 %v989
      %v1010 = vpack.c.b16 %v1007, %v1006
      %v1011 = vpack.c.b16 %v1009, %v1008
      %v1030 = vunpack.c.l.b16 %v990
      %v1031 = vunpack.c.l.b16 %v991
      %v1032 = vunpack.c.l.b16 %v992
      %v1033 = vunpack.c.l.b16 %v993
      %v1034 = vunpack.c.l.b16 %v994
      %v1035 = vunpack.c.l.b16 %v995
      %v1036 = vunpack.c.l.b16 %v996
      %v1037 = vunpack.c.l.b16 %v997
      %v1038 = vunpack.c.l.b16 %v998
      %v1039 = vunpack.c.l.b16 %v999
      %v1040 = vunpack.c.l.b16 %v1000
      %v1041 = vunpack.c.l.b16 %v1001
      %v1042 = vunpack.c.l.b16 %v1002
      %v1043 = vunpack.c.l.b16 %v1003
      %v1044 = vunpack.c.l.b16 %v1004
      %v1045 = vunpack.c.l.b16 %v1005
      %v1046 = vpack.c.b16 %v1031, %v1030
      %v1047 = vpack.c.b16 %v1033, %v1032
      %v1048 = vpack.c.b16 %v1035, %v1034
      %v1049 = vpack.c.b16 %v1037, %v1036
      %v1050 = vpack.c.b16 %v1039, %v1038
      %v1051 = vpack.c.b16 %v1041, %v1040
      %v1052 = vpack.c.b16 %v1043, %v1042
      %v1053 = vpack.c.b16 %v1045, %v1044
      %1062 = vmatprep.subr.bf16.mxu0 0
      %1063 = vmatpush1.bf16.msra.mxu0 %v1053
      %1064 = vmatprep.subr.bf16.mxu0 0
      %1065 = vmatpush1.bf16.msra.mxu0 %v1052
      %1066 = vmatprep.subr.bf16.mxu0 0
      %1067 = vmatpush1.bf16.msra.mxu0 %v1051
      %1068 = vmatprep.subr.bf16.mxu0 0
      %1069 = vmatpush1.bf16.msra.mxu0 %v1050
      %1070 = vmatprep.subr.bf16.mxu0 0
      %1071 = vmatpush1.bf16.msra.mxu0 %v1049
      %1072 = vmatprep.subr.bf16.mxu0 0
      %1073 = vmatpush1.bf16.msra.mxu0 %v1048
      %1074 = vmatprep.subr.bf16.mxu0 0
      %1075 = vmatpush1.bf16.msra.mxu0 %v1047
      %1076 = vmatprep.subr.bf16.mxu0 0
      %1077 = vmatpush1.bf16.msra.mxu0 %v1046
      %1078 = vmatprep.subr.bf16.mxu0 0
      %1079 = vmatpush2.bf16.msra.mxu0 0
      %1080 = vmatprep.subr.bf16.mxu0 0
      %1081 = vmatpush2.bf16.msra.mxu0 0
      %1082 = vmatprep.subr.bf16.mxu0 0
      %1083 = vmatpush2.bf16.msra.mxu0 0
      %1084 = vmatprep.subr.bf16.mxu0 0
      %1085 = vmatpush2.bf16.msra.mxu0 0
      %1086 = vmatprep.subr.bf16.mxu0 0
      %1087 = vmatpush2.bf16.msra.mxu0 0
      %1088 = vmatprep.subr.bf16.mxu0 0
      %1089 = vmatpush2.bf16.msra.mxu0 0
      %1090 = vmatprep.subr.bf16.mxu0 0
      %1091 = vmatpush2.bf16.msra.mxu0 0
      %1092 = vmatprep.subr.bf16.mxu0 0
      %1093 = vmatpush2.bf16.msra.mxu0 0
      %1094 = vmatprep.mubr.bf16.mxu0 0
      %1095 = vmatmul.mubr.bf16.gmra.mxu0 %v1010
      %v1096 = vpop.f32.mrf.mxu0
      %v1097 = vadd.f32 0.0, %v1096
      %v1098 = vpop.f32.mrf.mxu0
      %v1099 = vpop.f32.mrf.mxu0
      %v1100 = vadd.f32 0.0, %v1099
      %v1101 = vpop.f32.mrf.mxu0
      %1102 = vmatprep.mubr.bf16.mxu0 0
      %1103 = vmatmul.mubr.bf16.gmra.mxu0 %v1011
      %v1104 = vpop.f32.mrf.mxu0
      %v1105 = vadd.f32 0.0, %v1104
      %v1106 = vpop.f32.mrf.mxu0
      %v1107 = vpop.f32.mrf.mxu0
      %v1108 = vadd.f32 0.0, %v1107
      %v1109 = vpop.f32.mrf.mxu0
      %1110 = vdwg.mxu0
      %v1111 = vadd.f32 %v955, %v1097
      %v1112 = vadd.f32 %v956, %v1100
      %v1113 = vadd.f32 %v957, %v1105
      %v1114 = vadd.f32 %v958, %v1108
      %v1115 = vld [vmem:[%s6] sm:$0x1]
      %v1117 = vlaneseq
      %v1118 = vshrl.u32 %v1117, 7
      %v1119 = vsub.s32 0, %v1118
      %v1120 = vrot.slane %v1115, %v1119
      %v1122 = vadd.f32 %v1111, %v1120
      %v1123 = vadd.f32 %v1112, %v1120
      %v1124 = vadd.f32 %v1113, %v1120
      %v1125 = vadd.f32 %v1114, %v1120
      %vm1126 = vcmp.ge.f32.partialorder %v1122, 0.0
      %vm1127 = vcmp.ge.f32.partialorder %v1123, 0.0
      %vm1128 = vcmp.ge.f32.partialorder %v1124, 0.0
      %vm1129 = vcmp.ge.f32.partialorder %v1125, 0.0
      %v1130 = vmul.f32 %v1122, 0.1
      %v1131 = vmul.f32 %v1123, 0.1
      %v1132 = vmul.f32 %v1124, 0.1
      %v1133 = vmul.f32 %v1125, 0.1
      %v1134 = vsel %vm1126, %v1122, %v1130
      %v1135 = vsel %vm1127, %v1123, %v1131
      %v1136 = vsel %vm1128, %v1124, %v1132
      %v1137 = vsel %vm1129, %v1125, %v1133
      %v1138 = vpack.c.bf16 %v1134, %v1134
      %v1139 = vpack.c.bf16 %v1135, %v1135
      %v1140 = vpack.c.bf16 %v1136, %v1136
      %v1141 = vpack.c.bf16 %v1137, %v1137
      %1142 = vst [vmem:[%s283] sm:$0xf] %v1138
      %1143 = vst [vmem:[%s283 + $0x4] sm:$0xf] %v1139
      %1144 = vst [vmem:[%s283 + $0x8] sm:$0xf] %v1140
      %1145 = vst [vmem:[%s283 + $0xc] sm:$0xf] %v1141
      %s1146 = smul.u32 4, %s18
      %p1147 = scmp.lt.s32.totalorder %s1146, 7
      %s1148 = scalar_select %p1147, %s1146, 7
      %s1149 = smul.addr %s1148, 4
      %s1150 = scalar_lea.vmem %s7, %s1149
      // Predicated region
      $region49: #{a_call__.7} parent=47 // pred_check
        %p1151 = pneg %p188
      $region50: #{a_call__.7} parent=47 // pred_check_branch
        %1153 = sbr.rel (%p1151) target = $region52
      $region51: #{a_call__.7} parent=47 // pred_region
        %s1154 = smul.u32 4, %s18
      $region52: #{a_call__.7} parent=47 // pred_fallthru
        _
    $region48: #{a_call__.7} parent=5 // pred_fallthru
      _
    %p1155 = scmp.le.s32.totalorder 2, %s13
    // Predicated region
    $region53: #{a_call__.7} parent=5 // pred_check
      %p1156 = pneg %p1155
    $region54: #{a_call__.7} parent=5 // pred_check_branch
      %1158 = sbr.rel (%p1156) target = $region56
    $region55: #{a_call__.7} parent=5 // pred_region
      %s1159 = ssub.s32 %s13, 2
      // Predicated region
      $region57: #{a_call__.7} parent=55 // pred_check
        %p1160 = pneg %p194
      $region58: #{a_call__.7} parent=55 // pred_check_branch
        %1162 = sbr.rel (%p1160) target = $region60
      $region59: #{a_call__.7} parent=55 // pred_region
        %s1163 = smul.u32 4, %s19
        %p1164 = scmp.lt.s32.totalorder %s1163, 7
        %s1165 = scalar_select %p1164, %s1163, 7
        %s1166 = smul.addr %s1165, 4
        %s1167 = scalar_lea.vmem %s7, %s1166
      $region60: #{a_call__.7} parent=55 // pred_fallthru
        _
    $region56: #{a_call__.7} parent=5 // pred_fallthru
      _
  $region6: #{a_call__.7} parent=0 // loop_footer
    %s17 = sadd.s32 1, %s13
  $region7: #{a_call__.7} parent=0 // loop_footer_branch
    %12 = sbr.rel target = $region3
  $region8: #{a_call__.7} parent=0 // loop_exit
    _

</llo_original>
